<compile_context>
chip_gen: v7x
topology: tpu7x:2x2x1
jax: 0.10.0
libtpu: 0.0.40
codegen_flags: <defaults>
</compile_context>

<pallas_src>
import jax
import jax.numpy as jnp
from jax.experimental import pallas as pl
from jax.experimental.pallas import tpu as pltpu

HIDDEN_PAD = 64  # hidden width 50 padded up to an aligned 64


def wave_pinn_kernel(x_ref, t_ref, w1_ref, b1_ref, w2_ref, b2_ref,
                     w3_ref, b3_ref, w4_ref, b4_ref, o_ref):
    # Batch tile lives on lanes: x_row/t_row are (1, tm), activations (64, tm).
    x_row = x_ref[...]                                        # (1, tm) f32
    t_row = t_ref[...]                                        # (1, tm) f32

    w2 = w2_ref[...]                                          # (64, 64) cdt
    w3 = w3_ref[...]                                          # (64, 64) cdt
    w4 = w4_ref[...]                                          # (1, 64)  cdt
    cdt = w2.dtype                                            # f32 or bf16

    # Layer 1 (in=2): VPU outer-product FMA in f32, avoids a depth-2 MXU pass.
    w1 = w1_ref[...]                                          # (64, 2) f32
    pre1 = w1[:, 0:1] * x_row + w1[:, 1:2] * t_row + b1_ref[...]   # (64, tm) f32
    h = jnp.tanh(pre1.astype(cdt))                            # (64, tm) cdt

    # Layers 2-3: MXU matmuls (bf16 or f32 operands), f32 accumulation,
    # f32 bias add, tanh on compute-dtype input.
    pre2 = jnp.dot(w2, h, preferred_element_type=jnp.float32) + b2_ref[...]
    h = jnp.tanh(pre2.astype(cdt))
    pre3 = jnp.dot(w3, h, preferred_element_type=jnp.float32) + b3_ref[...]
    h = jnp.tanh(pre3.astype(cdt))

    # Layer 4: (1,64) @ (64,tm) -> (1,tm); lane-dense store.
    u = jnp.dot(w4, h, preferred_element_type=jnp.float32) + b4_ref[...]
    o_ref[...] = u.astype(o_ref.dtype)


def _pad_hidden(params, H=HIDDEN_PAD):
    """Zero-pad the 50-wide hidden layers up to H (sublane/MXU aligned).

    Zero pads are exact: tanh(0) = 0, and the padded rows/cols only ever
    multiply those zeros, so the forward result is unchanged.
    """
    (w1, b1), (w2, b2), (w3, b3), (w4, b4) = params
    h0 = w1.shape[0]
    p = H - h0
    w1p = jnp.pad(w1, ((0, p), (0, 0)))
    b1p = jnp.pad(b1, ((0, p), (0, 0)))
    w2p = jnp.pad(w2, ((0, p), (0, p)))
    b2p = jnp.pad(b2, ((0, p), (0, 0)))
    w3p = jnp.pad(w3, ((0, p), (0, p)))
    b3p = jnp.pad(b3, ((0, p), (0, 0)))
    w4p = jnp.pad(w4, ((0, 0), (0, p)))
    return (w1p, b1p), (w2p, b2p), (w3p, b3p), (w4p, b4)


def _pick_tile(N, tm_max):
    """Largest lane-aligned tile <= tm_max that still leaves >= 2 grid steps
    (so both v7x TensorCores get work through the 'parallel' axis)."""
    lanes = -(-N // 128) * 128               # round batch up to the lane width
    if lanes >= 256:
        tm = min(tm_max, max(128, (lanes // 2 // 128) * 128))
    else:
        tm = 128
    return tm


def wave_pinn_forward(x, t, params, *, tm_max=4096, compute_dtype=jnp.float32):
    """x, t: (N, 1) float32.  Returns u(x, t): (N, 1) float32.

    compute_dtype: jnp.float32 (exact; use on v5e) or jnp.bfloat16
    (v6e/v7x fast path: bf16 tanh + bf16 MXU operands, f32 accumulation).
    """
    assert tm_max % 128 == 0, "tile cap must be a multiple of the 128-lane width"
    (w1, b1), (w2, b2), (w3, b3), (w4, b4) = _pad_hidden(params)
    w2 = w2.astype(compute_dtype)
    w3 = w3.astype(compute_dtype)
    w4 = w4.astype(compute_dtype)

    N = x.shape[0]
    tm = _pick_tile(N, tm_max)
    n_blocks = pl.cdiv(N, tm)
    N_pad = n_blocks * tm

    # Batch-on-lanes: (N,1) -> (1,N), zero-pad to a multiple of tm.
    x_row = jnp.pad(x.reshape(1, N).astype(jnp.float32), ((0, 0), (0, N_pad - N)))
    t_row = jnp.pad(t.reshape(1, N).astype(jnp.float32), ((0, 0), (0, N_pad - N)))

    def full_spec(shape):
        # Whole (tiny) parameter array, grid-invariant -> resident every step.
        return pl.BlockSpec(shape, lambda i: (0, 0))

    grid_spec = pltpu.PrefetchScalarGridSpec(
        num_scalar_prefetch=0,
        grid=(n_blocks,),
        in_specs=[
            pl.BlockSpec((1, tm), lambda i: (0, i)),   # x tile (lane-dense)
            pl.BlockSpec((1, tm), lambda i: (0, i)),   # t tile (lane-dense)
            full_spec(w1.shape), full_spec(b1.shape),
            full_spec(w2.shape), full_spec(b2.shape),
            full_spec(w3.shape), full_spec(b3.shape),
            full_spec(w4.shape), full_spec(b4.shape),
        ],
        out_specs=pl.BlockSpec((1, tm), lambda i: (0, i)),
    )

    # Roofline hint: the kernel is EUP (tanh)-bound, not MXU/HBM-bound.
    H = HIDDEN_PAD
    flops_per_row = 2 * (2 * H + H * H + H * H + H * 1)
    n_param_elems = sum(int(a.size) for a in (w1, b1, w2, b2, w3, b3, w4, b4))
    cost = pl.CostEstimate(
        flops=flops_per_row * N_pad,
        transcendentals=3 * H * N_pad,
        bytes_accessed=4 * (3 * N_pad + n_param_elems),
    )

    u_row = pl.pallas_call(
        wave_pinn_kernel,
        out_shape=jax.ShapeDtypeStruct((1, N_pad), jnp.float32),
        grid_spec=grid_spec,
        compiler_params=pltpu.CompilerParams(
            dimension_semantics=("parallel",),
            vmem_limit_bytes=32 * 1024 * 1024,
        ),
        cost_estimate=cost,
    )(x_row, t_row, w1, b1, w2, b2, w3, b3, w4, b4)

    return u_row[:, :N].reshape(N, 1)


def init_params(key):
    """Deterministic init matching torch.nn.Linear default
    (U[-1/sqrt(fan_in), +1/sqrt(fan_in)]).
    Weights stored torch-style as (out, in); biases as (out, 1)."""
    dims = [(2, 50), (50, 50), (50, 50), (50, 1)]
    params = []
    for (fan_in, fan_out) in dims:
        key, kw, kb = jax.random.split(key, 3)
        bound = 1.0 / jnp.sqrt(float(fan_in))
        w = jax.random.uniform(kw, (fan_out, fan_in), jnp.float32,
                               minval=-bound, maxval=bound)
        b = jax.random.uniform(kb, (fan_out, 1), jnp.float32,
                               minval=-bound, maxval=bound)
        params.append((w, b))
    return params


def wave_pinn_reference(x, t, params):
    """Pure-JAX reference for correctness checking (row-major, like torch)."""
    X = jnp.concatenate([x, t], axis=1)                       # (N, 2)
    (w1, b1), (w2, b2), (w3, b3), (w4, b4) = params
    h = jnp.tanh(X @ w1.T + b1.T)
    h = jnp.tanh(h @ w2.T + b2.T)
    h = jnp.tanh(h @ w3.T + b3.T)
    return h @ w4.T + b4.T


if __name__ == "__main__":
    key = jax.random.PRNGKey(0)
    k_params, k_x, k_t = jax.random.split(key, 3)

    params = init_params(k_params)

    # Small batch of (x, t) collocation points; N is deliberately NOT a
    # multiple of the lane width to exercise the padding path, and large
    # enough that the adaptive tile picker produces >= 2 parallel grid steps.
    N = 1000
    x = jax.random.uniform(k_x, (N, 1), jnp.float32)
    t = jax.random.uniform(k_t, (N, 1), jnp.float32)

    u_ref = wave_pinn_reference(x, t, params)

    # Exact f32 path (correctness mode / v5e).
    u_f32 = wave_pinn_forward(x, t, params, tm_max=4096,
                              compute_dtype=jnp.float32)
    u_f32 = jax.block_until_ready(u_f32)
    assert u_f32.shape == (N, 1)
    assert jnp.allclose(u_f32, u_ref, atol=1e-5, rtol=1e-5), \
        "f32 kernel mismatch vs reference"

    # bf16 fast path (v6e/v7x): bf16 tanh + bf16 MXU operands, f32 accum.
    u_bf16 = wave_pinn_forward(x, t, params, tm_max=4096,
                               compute_dtype=jnp.bfloat16)
    u_bf16 = jax.block_until_ready(u_bf16)
    assert u_bf16.shape == (N, 1)
    assert jnp.allclose(u_bf16, u_ref, atol=1e-1, rtol=1e-1), \
        "bf16 kernel diverged from reference beyond bf16 tolerance"

    print("KERNEL_OK")
</pallas_src>

<mosaic_0001>
module attributes {stable_mosaic.version = 11 : i64} {
  func.func @wave_pinn_kernel(%arg0: i32, %arg1: memref<1x512xf32, #tpu.memory_space<vmem>>, %arg2: memref<1x512xf32, #tpu.memory_space<vmem>>, %arg3: memref<64x2xf32, #tpu.memory_space<vmem>>, %arg4: memref<64x1xf32, #tpu.memory_space<vmem>>, %arg5: memref<64x64xf32, #tpu.memory_space<vmem>>, %arg6: memref<64x1xf32, #tpu.memory_space<vmem>>, %arg7: memref<64x64xf32, #tpu.memory_space<vmem>>, %arg8: memref<64x1xf32, #tpu.memory_space<vmem>>, %arg9: memref<1x64xf32, #tpu.memory_space<vmem>>, %arg10: memref<1x1xf32, #tpu.memory_space<vmem>>, %arg11: memref<1x512xf32, #tpu.memory_space<vmem>>) attributes {dimension_semantics = [#tpu.dimension_semantics<parallel>], iteration_bounds = array<i64: 2>, scalar_prefetch = 0 : i64, scratch_operands = 0 : i64, tpu.core_type = #tpu.core_type<tc>, window_params = [{transform_indices = @transform_0, window_bounds = array<i64: 1, 512>}, {transform_indices = @transform_1, window_bounds = array<i64: 1, 512>}, {pipeline_mode = #tpu.pipeline_mode<synchronous>, transform_indices = @transform_2, window_bounds = array<i64: 64, 2>}, {pipeline_mode = #tpu.pipeline_mode<synchronous>, transform_indices = @transform_3, window_bounds = array<i64: 64, 1>}, {pipeline_mode = #tpu.pipeline_mode<synchronous>, transform_indices = @transform_4, window_bounds = array<i64: 64, 64>}, {pipeline_mode = #tpu.pipeline_mode<synchronous>, transform_indices = @transform_5, window_bounds = array<i64: 64, 1>}, {pipeline_mode = #tpu.pipeline_mode<synchronous>, transform_indices = @transform_6, window_bounds = array<i64: 64, 64>}, {pipeline_mode = #tpu.pipeline_mode<synchronous>, transform_indices = @transform_7, window_bounds = array<i64: 64, 1>}, {pipeline_mode = #tpu.pipeline_mode<synchronous>, transform_indices = @transform_8, window_bounds = array<i64: 1, 64>}, {pipeline_mode = #tpu.pipeline_mode<synchronous>, transform_indices = @transform_9, window_bounds = array<i64: 1, 1>}, {transform_indices = @transform_10, window_bounds = array<i64: 1, 512>}]} {
    %c0 = arith.constant 0 : index
    %c0_0 = arith.constant 0 : index
    %0 = vector.load %arg1[%c0, %c0_0] : memref<1x512xf32, #tpu.memory_space<vmem>>, vector<1x512xf32>
    %c0_1 = arith.constant 0 : index
    %c0_2 = arith.constant 0 : index
    %1 = vector.load %arg2[%c0_1, %c0_2] : memref<1x512xf32, #tpu.memory_space<vmem>>, vector<1x512xf32>
    %c0_3 = arith.constant 0 : index
    %c0_4 = arith.constant 0 : index
    %2 = vector.load %arg5[%c0_3, %c0_4] : memref<64x64xf32, #tpu.memory_space<vmem>>, vector<64x64xf32>
    %c0_5 = arith.constant 0 : index
    %c0_6 = arith.constant 0 : index
    %3 = vector.load %arg7[%c0_5, %c0_6] : memref<64x64xf32, #tpu.memory_space<vmem>>, vector<64x64xf32>
    %c0_7 = arith.constant 0 : index
    %c0_8 = arith.constant 0 : index
    %4 = vector.load %arg9[%c0_7, %c0_8] : memref<1x64xf32, #tpu.memory_space<vmem>>, vector<1x64xf32>
    %c0_9 = arith.constant 0 : index
    %c0_10 = arith.constant 0 : index
    %5 = vector.load %arg3[%c0_9, %c0_10] : memref<64x2xf32, #tpu.memory_space<vmem>>, vector<64x2xf32>
    %6 = vector.extract_strided_slice %5 {offsets = [0, 0], sizes = [64, 1], strides = [1, 1]} : vector<64x2xf32> to vector<64x1xf32>
    %7 = vector.broadcast %6 : vector<64x1xf32> to vector<64x512xf32>
    %8 = vector.broadcast %0 : vector<1x512xf32> to vector<64x512xf32>
    %9 = arith.mulf %7, %8 : vector<64x512xf32>
    %10 = vector.extract_strided_slice %5 {offsets = [0, 1], sizes = [64, 1], strides = [1, 1]} : vector<64x2xf32> to vector<64x1xf32>
    %11 = vector.broadcast %10 : vector<64x1xf32> to vector<64x512xf32>
    %12 = vector.broadcast %1 : vector<1x512xf32> to vector<64x512xf32>
    %13 = arith.mulf %11, %12 : vector<64x512xf32>
    %14 = arith.addf %9, %13 : vector<64x512xf32>
    %c0_11 = arith.constant 0 : index
    %c0_12 = arith.constant 0 : index
    %15 = vector.load %arg4[%c0_11, %c0_12] : memref<64x1xf32, #tpu.memory_space<vmem>>, vector<64x1xf32>
    %16 = vector.broadcast %15 : vector<64x1xf32> to vector<64x512xf32>
    %17 = arith.addf %14, %16 : vector<64x512xf32>
    %18 = math.tanh %17 : vector<64x512xf32>
    %cst = arith.constant dense<0.000000e+00> : vector<64x512xf32>
    %19 = tpu.matmul %2, %18, %cst {dimension_numbers = #tpu.dot_dimension_numbers<[1], [0], [0], [1], [0, 0, 1, 1], [], []>} : vector<64x64xf32>, vector<64x512xf32>, vector<64x512xf32> -> vector<64x512xf32>
    %c0_13 = arith.constant 0 : index
    %c0_14 = arith.constant 0 : index
    %20 = vector.load %arg6[%c0_13, %c0_14] : memref<64x1xf32, #tpu.memory_space<vmem>>, vector<64x1xf32>
    %21 = vector.broadcast %20 : vector<64x1xf32> to vector<64x512xf32>
    %22 = arith.addf %19, %21 : vector<64x512xf32>
    %23 = math.tanh %22 : vector<64x512xf32>
    %cst_15 = arith.constant dense<0.000000e+00> : vector<64x512xf32>
    %24 = tpu.matmul %3, %23, %cst_15 {dimension_numbers = #tpu.dot_dimension_numbers<[1], [0], [0], [1], [0, 0, 1, 1], [], []>} : vector<64x64xf32>, vector<64x512xf32>, vector<64x512xf32> -> vector<64x512xf32>
    %c0_16 = arith.constant 0 : index
    %c0_17 = arith.constant 0 : index
    %25 = vector.load %arg8[%c0_16, %c0_17] : memref<64x1xf32, #tpu.memory_space<vmem>>, vector<64x1xf32>
    %26 = vector.broadcast %25 : vector<64x1xf32> to vector<64x512xf32>
    %27 = arith.addf %24, %26 : vector<64x512xf32>
    %28 = math.tanh %27 : vector<64x512xf32>
    %cst_18 = arith.constant dense<0.000000e+00> : vector<1x512xf32>
    %29 = tpu.matmul %4, %28, %cst_18 {dimension_numbers = #tpu.dot_dimension_numbers<[1], [0], [0], [1], [0, 0, 1, 1], [], []>} : vector<1x64xf32>, vector<64x512xf32>, vector<1x512xf32> -> vector<1x512xf32>
    %c0_19 = arith.constant 0 : index
    %c0_20 = arith.constant 0 : index
    %30 = vector.load %arg10[%c0_19, %c0_20] : memref<1x1xf32, #tpu.memory_space<vmem>>, vector<1x1xf32>
    %31 = vector.broadcast %30 : vector<1x1xf32> to vector<1x512xf32>
    %32 = arith.addf %29, %31 : vector<1x512xf32>
    %c0_21 = arith.constant 0 : index
    %c0_22 = arith.constant 0 : index
    %33 = vector.load %arg11[%c0_21, %c0_22] : memref<1x512xf32, #tpu.memory_space<vmem>>, vector<1x512xf32>
    tpu.vector_store %arg11[%c0_21, %c0_22], %32 {strides = array<i32>} : memref<1x512xf32, #tpu.memory_space<vmem>>, vector<1x512xf32>,
    return
  }
  func.func @transform_0(%arg0: i32) -> (i32, i32) {
    %c0_i32 = arith.constant 0 : i32
    %c0_i32_0 = arith.constant 0 : i32
    return %c0_i32, %arg0 : i32, i32
  }
  func.func @transform_1(%arg0: i32) -> (i32, i32) {
    %c0_i32 = arith.constant 0 : i32
    %c0_i32_0 = arith.constant 0 : i32
    return %c0_i32, %arg0 : i32, i32
  }
  func.func @transform_2(%arg0: i32) -> (i32, i32) {
    %c0_i32 = arith.constant 0 : i32
    %c0_i32_0 = arith.constant 0 : i32
    %c0_i32_1 = arith.constant 0 : i32
    return %c0_i32, %c0_i32_0 : i32, i32
  }
  func.func @transform_3(%arg0: i32) -> (i32, i32) {
    %c0_i32 = arith.constant 0 : i32
    %c0_i32_0 = arith.constant 0 : i32
    %c0_i32_1 = arith.constant 0 : i32
    return %c0_i32, %c0_i32_0 : i32, i32
  }
  func.func @transform_4(%arg0: i32) -> (i32, i32) {
    %c0_i32 = arith.constant 0 : i32
    %c0_i32_0 = arith.constant 0 : i32
    %c0_i32_1 = arith.constant 0 : i32
    return %c0_i32, %c0_i32_0 : i32, i32
  }
  func.func @transform_5(%arg0: i32) -> (i32, i32) {
    %c0_i32 = arith.constant 0 : i32
    %c0_i32_0 = arith.constant 0 : i32
    %c0_i32_1 = arith.constant 0 : i32
    return %c0_i32, %c0_i32_0 : i32, i32
  }
  func.func @transform_6(%arg0: i32) -> (i32, i32) {
    %c0_i32 = arith.constant 0 : i32
    %c0_i32_0 = arith.constant 0 : i32
    %c0_i32_1 = arith.constant 0 : i32
    return %c0_i32, %c0_i32_0 : i32, i32
  }
  func.func @transform_7(%arg0: i32) -> (i32, i32) {
    %c0_i32 = arith.constant 0 : i32
    %c0_i32_0 = arith.constant 0 : i32
    %c0_i32_1 = arith.constant 0 : i32
    return %c0_i32, %c0_i32_0 : i32, i32
  }
  func.func @transform_8(%arg0: i32) -> (i32, i32) {
    %c0_i32 = arith.constant 0 : i32
    %c0_i32_0 = arith.constant 0 : i32
    %c0_i32_1 = arith.constant 0 : i32
    return %c0_i32, %c0_i32_0 : i32, i32
  }
  func.func @transform_9(%arg0: i32) -> (i32, i32) {
    %c0_i32 = arith.constant 0 : i32
    %c0_i32_0 = arith.constant 0 : i32
    %c0_i32_1 = arith.constant 0 : i32
    return %c0_i32, %c0_i32_0 : i32, i32
  }
  func.func @transform_10(%arg0: i32) -> (i32, i32) {
    %c0_i32 = arith.constant 0 : i32
    %c0_i32_0 = arith.constant 0 : i32
    return %c0_i32, %arg0 : i32, i32
  }
}

</mosaic_0001>

<llo_original>
// kernel: tpu_custom_call.1
$region0: #{tpu_custom_call.1}
  #allocation0 [shape = 'u32[]', space=smem, size = 0x4, offset = 0x4, fixed_abs, tag = 'smem constant byte address 0x4 - core index']
  #allocation1 [shape = 'u32[144,128]{1,0:T(1,128)}', space=vmem, size = 0x12000, scoped, tag = 'internal scratch']
  #allocation2 [shape = 'f32[1,1]{1,0:T(1,128)S(1)}', space=vmem, size = 0x200, scoped, tag = 'scoped memory for tpu_custom_call.1']
  %s0 = inlined_call_operand.vmem [shape: f32[1,1024], index: 0, kind: input, shape index: {}]
  %s1 = inlined_call_operand.vmem [shape: f32[1,1024], index: 1, kind: input, shape index: {}]
  %s2 = inlined_call_operand.vmem [shape: f32[64,2], index: 2, kind: input, shape index: {}]
  %s3 = inlined_call_operand.vmem [shape: f32[64,1], index: 3, kind: input, shape index: {}]
  %s4 = inlined_call_operand.vmem [shape: f32[64,64], index: 4, kind: input, shape index: {}]
  %s5 = inlined_call_operand.vmem [shape: f32[64,1], index: 5, kind: input, shape index: {}]
  %s6 = inlined_call_operand.vmem [shape: f32[64,64], index: 6, kind: input, shape index: {}]
  %s7 = inlined_call_operand.vmem [shape: f32[64,1], index: 7, kind: input, shape index: {}]
  %s8 = inlined_call_operand.vmem [shape: f32[1,64], index: 8, kind: input, shape index: {}]
  %s9 = inlined_call_operand.<no memory space> [shape: f32[1,1], index: 9, kind: input, shape index: {}]
  %s10 = inlined_call_operand.hbm [shape: f32[1,1024], index: 10, kind: output, shape index: {}]
  %s11 = sld [smem:[#allocation0]]
  $region73: #{tpu_custom_call.1} parent=0
    _
  %s13 = ssub.s32 1, %s11
  %s14 = scalar_select 0, %s13, %s11
  %v15 = vstv %s9
  %16 = vst [vmem:[#allocation2] sm:$0x1] %v15
  $region1: #{tpu_custom_call.1} parent=0
    #allocation3 [shape = 'u8[4096]{0}', space=vmem, size = 0x1000, scoped, tag = 'output window, operand 0']
    #allocation4 [shape = 's32[2]{0}', space=sflag, size = 0x8, scoped, tag = 'scoped memory for tpu_custom_call.1']
    %17 = vsyncpa [#allocation4], 0
    %s18 = scalar_lea.sflag [#allocation4], 1
    %19 = vsyncpa %s18, 0
    loop: start=0, step=1, limit=4
    $region2: #{tpu_custom_call.1} parent=1 // loop_pre_header
      _
    $region3: #{tpu_custom_call.1} parent=1 // loop_header
      %s21 = sphi 0, %s25
      %p22 = scmp.ge.s32.totalorder %s21, 4
      %s31 = sphi 0, %s33
      %s34 = sphi 0, %s31
      %s35 = sphi 0, %s34
      %s51 = sphi 0, %s35
      %s57 = sphi 0, %s59
      %s60 = sphi 0, %s57
      %s61 = sphi 0, %s60
      %s77 = sphi 0, %s61
      %s81 = sphi 0, %s81
      %s83 = sphi 0, %s81
      %s84 = sphi 0, %s83
      %s98 = sphi 0, %s84
      %s102 = sphi 0, %s102
      %s104 = sphi 0, %s102
      %s105 = sphi 0, %s104
      %s119 = sphi 0, %s105
      %s123 = sphi 0, %s123
      %s125 = sphi 0, %s123
      %s126 = sphi 0, %s125
      %s140 = sphi 0, %s126
      %s144 = sphi 0, %s144
      %s146 = sphi 0, %s144
      %s147 = sphi 0, %s146
      %s161 = sphi 0, %s147
      %s165 = sphi 0, %s165
      %s167 = sphi 0, %s165
      %s168 = sphi 0, %s167
      %s182 = sphi 0, %s168
      %s186 = sphi 0, %s186
      %s188 = sphi 0, %s186
      %s189 = sphi 0, %s188
      %s203 = sphi 0, %s189
      %s207 = sphi 0, %s207
      %s209 = sphi 0, %s207
      %s210 = sphi 0, %s209
      %s224 = sphi 0, %s210
      %s228 = sphi 0, %s228
      %s230 = sphi 0, %s228
      %s231 = sphi 0, %s230
      %s245 = sphi 0, %s231
      %s251 = sphi 0, %s253
      %s254 = sphi 0, %s251
      %s255 = sphi 0, %s254
      %s271 = sphi 0, %s255
    $region4: #{tpu_custom_call.1} parent=1 // loop_header_branch
      %24 = sbr.rel (%p22) target = $region8
    $region5: #{tpu_custom_call.1} parent=1 // loop_body
      %s26 = ssub.s32 %s21, 1
      %s27 = ssub.s32 %s21, 2
      %s28 = sadd.s32 %s21, 1
      %s29 = ssub.s32 %s21, %s28
      %p30 = scmp.eq.s32.totalorder %s29, 0
      %s32 = sadd.s32 %s31, 1
      %s33 = scalar_select %p30, %s31, %s32
      %p36 = pneg %p30
      %p37 = scmp.eq.s32.totalorder %s21, 1
      %p38 = por %p36, %p37
      %p39 = scmp.ne.s32.totalorder %s31, %s34
      %p40 = scmp.eq.s32.totalorder %s21, 0
      %p41 = por %p39, %p40
      %p42 = scmp.ne.s32.totalorder %s31, %s34
      %p43 = scmp.eq.s32.totalorder %s26, 1
      %p44 = por %p42, %p43
      %p45 = scmp.ne.s32.totalorder %s34, %s35
      %p46 = scmp.eq.s32.totalorder %s26, 0
      %p47 = por %p45, %p46
      %p48 = scmp.ne.s32.totalorder %s34, %s35
      %p49 = scmp.eq.s32.totalorder %s27, 1
      %p50 = por %p48, %p49
      %p52 = scmp.ne.s32.totalorder %s35, %s51
      %p53 = scmp.eq.s32.totalorder %s27, 0
      %p54 = por %p52, %p53
      %s55 = ssub.s32 %s21, %s28
      %p56 = scmp.eq.s32.totalorder %s55, 0
      %s58 = sadd.s32 %s57, 1
      %s59 = scalar_select %p56, %s57, %s58
      %p62 = pneg %p56
      %p63 = scmp.eq.s32.totalorder %s21, 1
      %p64 = por %p62, %p63
      %p65 = scmp.ne.s32.totalorder %s57, %s60
      %p66 = scmp.eq.s32.totalorder %s21, 0
      %p67 = por %p65, %p66
      %p68 = scmp.ne.s32.totalorder %s57, %s60
      %p69 = scmp.eq.s32.totalorder %s26, 1
      %p70 = por %p68, %p69
      %p71 = scmp.ne.s32.totalorder %s60, %s61
      %p72 = scmp.eq.s32.totalorder %s26, 0
      %p73 = por %p71, %p72
      %p74 = scmp.ne.s32.totalorder %s60, %s61
      %p75 = scmp.eq.s32.totalorder %s27, 1
      %p76 = por %p74, %p75
      %p78 = scmp.ne.s32.totalorder %s61, %s77
      %p79 = scmp.eq.s32.totalorder %s27, 0
      %p80 = por %p78, %p79
      %s82 = sadd.s32 %s81, 1
      %p85 = scmp.eq.s32.totalorder %s21, 1
      %p86 = scmp.ne.s32.totalorder %s81, %s83
      %p87 = scmp.eq.s32.totalorder %s21, 0
      %p88 = por %p86, %p87
      %p89 = scmp.ne.s32.totalorder %s81, %s83
      %p90 = scmp.eq.s32.totalorder %s26, 1
      %p91 = por %p89, %p90
      %p92 = scmp.ne.s32.totalorder %s83, %s84
      %p93 = scmp.eq.s32.totalorder %s26, 0
      %p94 = por %p92, %p93
      %p95 = scmp.ne.s32.totalorder %s83, %s84
      %p96 = scmp.eq.s32.totalorder %s27, 1
      %p97 = por %p95, %p96
      %p99 = scmp.ne.s32.totalorder %s84, %s98
      %p100 = scmp.eq.s32.totalorder %s27, 0
      %p101 = por %p99, %p100
      %s103 = sadd.s32 %s102, 1
      %p106 = scmp.eq.s32.totalorder %s21, 1
      %p107 = scmp.ne.s32.totalorder %s102, %s104
      %p108 = scmp.eq.s32.totalorder %s21, 0
      %p109 = por %p107, %p108
      %p110 = scmp.ne.s32.totalorder %s102, %s104
      %p111 = scmp.eq.s32.totalorder %s26, 1
      %p112 = por %p110, %p111
      %p113 = scmp.ne.s32.totalorder %s104, %s105
      %p114 = scmp.eq.s32.totalorder %s26, 0
      %p115 = por %p113, %p114
      %p116 = scmp.ne.s32.totalorder %s104, %s105
      %p117 = scmp.eq.s32.totalorder %s27, 1
      %p118 = por %p116, %p117
      %p120 = scmp.ne.s32.totalorder %s105, %s119
      %p121 = scmp.eq.s32.totalorder %s27, 0
      %p122 = por %p120, %p121
      %s124 = sadd.s32 %s123, 1
      %p127 = scmp.eq.s32.totalorder %s21, 1
      %p128 = scmp.ne.s32.totalorder %s123, %s125
      %p129 = scmp.eq.s32.totalorder %s21, 0
      %p130 = por %p128, %p129
      %p131 = scmp.ne.s32.totalorder %s123, %s125
      %p132 = scmp.eq.s32.totalorder %s26, 1
      %p133 = por %p131, %p132
      %p134 = scmp.ne.s32.totalorder %s125, %s126
      %p135 = scmp.eq.s32.totalorder %s26, 0
      %p136 = por %p134, %p135
      %p137 = scmp.ne.s32.totalorder %s125, %s126
      %p138 = scmp.eq.s32.totalorder %s27, 1
      %p139 = por %p137, %p138
      %p141 = scmp.ne.s32.totalorder %s126, %s140
      %p142 = scmp.eq.s32.totalorder %s27, 0
      %p143 = por %p141, %p142
      %s145 = sadd.s32 %s144, 1
      %p148 = scmp.eq.s32.totalorder %s21, 1
      %p149 = scmp.ne.s32.totalorder %s144, %s146
      %p150 = scmp.eq.s32.totalorder %s21, 0
      %p151 = por %p149, %p150
      %p152 = scmp.ne.s32.totalorder %s144, %s146
      %p153 = scmp.eq.s32.totalorder %s26, 1
      %p154 = por %p152, %p153
      %p155 = scmp.ne.s32.totalorder %s146, %s147
      %p156 = scmp.eq.s32.totalorder %s26, 0
      %p157 = por %p155, %p156
      %p158 = scmp.ne.s32.totalorder %s146, %s147
      %p159 = scmp.eq.s32.totalorder %s27, 1
      %p160 = por %p158, %p159
      %p162 = scmp.ne.s32.totalorder %s147, %s161
      %p163 = scmp.eq.s32.totalorder %s27, 0
      %p164 = por %p162, %p163
      %s166 = sadd.s32 %s165, 1
      %p169 = scmp.eq.s32.totalorder %s21, 1
      %p170 = scmp.ne.s32.totalorder %s165, %s167
      %p171 = scmp.eq.s32.totalorder %s21, 0
      %p172 = por %p170, %p171
      %p173 = scmp.ne.s32.totalorder %s165, %s167
      %p174 = scmp.eq.s32.totalorder %s26, 1
      %p175 = por %p173, %p174
      %p176 = scmp.ne.s32.totalorder %s167, %s168
      %p177 = scmp.eq.s32.totalorder %s26, 0
      %p178 = por %p176, %p177
      %p179 = scmp.ne.s32.totalorder %s167, %s168
      %p180 = scmp.eq.s32.totalorder %s27, 1
      %p181 = por %p179, %p180
      %p183 = scmp.ne.s32.totalorder %s168, %s182
      %p184 = scmp.eq.s32.totalorder %s27, 0
      %p185 = por %p183, %p184
      %s187 = sadd.s32 %s186, 1
      %p190 = scmp.eq.s32.totalorder %s21, 1
      %p191 = scmp.ne.s32.totalorder %s186, %s188
      %p192 = scmp.eq.s32.totalorder %s21, 0
      %p193 = por %p191, %p192
      %p194 = scmp.ne.s32.totalorder %s186, %s188
      %p195 = scmp.eq.s32.totalorder %s26, 1
      %p196 = por %p194, %p195
      %p197 = scmp.ne.s32.totalorder %s188, %s189
      %p198 = scmp.eq.s32.totalorder %s26, 0
      %p199 = por %p197, %p198
      %p200 = scmp.ne.s32.totalorder %s188, %s189
      %p201 = scmp.eq.s32.totalorder %s27, 1
      %p202 = por %p200, %p201
      %p204 = scmp.ne.s32.totalorder %s189, %s203
      %p205 = scmp.eq.s32.totalorder %s27, 0
      %p206 = por %p204, %p205
      %s208 = sadd.s32 %s207, 1
      %p211 = scmp.eq.s32.totalorder %s21, 1
      %p212 = scmp.ne.s32.totalorder %s207, %s209
      %p213 = scmp.eq.s32.totalorder %s21, 0
      %p214 = por %p212, %p213
      %p215 = scmp.ne.s32.totalorder %s207, %s209
      %p216 = scmp.eq.s32.totalorder %s26, 1
      %p217 = por %p215, %p216
      %p218 = scmp.ne.s32.totalorder %s209, %s210
      %p219 = scmp.eq.s32.totalorder %s26, 0
      %p220 = por %p218, %p219
      %p221 = scmp.ne.s32.totalorder %s209, %s210
      %p222 = scmp.eq.s32.totalorder %s27, 1
      %p223 = por %p221, %p222
      %p225 = scmp.ne.s32.totalorder %s210, %s224
      %p226 = scmp.eq.s32.totalorder %s27, 0
      %p227 = por %p225, %p226
      %s229 = sadd.s32 %s228, 1
      %p232 = scmp.eq.s32.totalorder %s21, 1
      %p233 = scmp.ne.s32.totalorder %s228, %s230
      %p234 = scmp.eq.s32.totalorder %s21, 0
      %p235 = por %p233, %p234
      %p236 = scmp.ne.s32.totalorder %s228, %s230
      %p237 = scmp.eq.s32.totalorder %s26, 1
      %p238 = por %p236, %p237
      %p239 = scmp.ne.s32.totalorder %s230, %s231
      %p240 = scmp.eq.s32.totalorder %s26, 0
      %p241 = por %p239, %p240
      %p242 = scmp.ne.s32.totalorder %s230, %s231
      %p243 = scmp.eq.s32.totalorder %s27, 1
      %p244 = por %p242, %p243
      %p246 = scmp.ne.s32.totalorder %s231, %s245
      %p247 = scmp.eq.s32.totalorder %s27, 0
      %p248 = por %p246, %p247
      %s249 = ssub.s32 %s21, %s28
      %p250 = scmp.eq.s32.totalorder %s249, 0
      %s252 = sadd.s32 %s251, 1
      %s253 = scalar_select %p250, %s251, %s252
      %p256 = pneg %p250
      %p257 = scmp.eq.s32.totalorder %s21, 1
      %p258 = por %p256, %p257
      %p259 = scmp.ne.s32.totalorder %s251, %s254
      %p260 = scmp.eq.s32.totalorder %s21, 0
      %p261 = por %p259, %p260
      %p262 = scmp.ne.s32.totalorder %s251, %s254
      %p263 = scmp.eq.s32.totalorder %s26, 1
      %p264 = por %p262, %p263
      %p265 = scmp.ne.s32.totalorder %s254, %s255
      %p266 = scmp.eq.s32.totalorder %s26, 0
      %p267 = por %p265, %p266
      %p268 = scmp.ne.s32.totalorder %s254, %s255
      %p269 = scmp.eq.s32.totalorder %s27, 1
      %p270 = por %p268, %p269
      %p272 = scmp.ne.s32.totalorder %s255, %s271
      %p273 = scmp.eq.s32.totalorder %s27, 0
      %p274 = por %p272, %p273
      %p275 = scmp.le.s32.totalorder 1, %s21
      %p276 = scmp.lt.s32.totalorder %s21, 3
      %p277 = pnand %p275, %p276
      %p278 = pneg %p277
      // Predicated region
      $region9: #{tpu_custom_call.1} parent=5 // pred_check
        _
      $region10: #{tpu_custom_call.1} parent=5 // pred_check_branch
        %280 = sbr.rel (%p277) target = $region12
      $region11: #{tpu_custom_call.1} parent=5 // pred_region
        %s281 = ssub.s32 %s21, 1
        // Predicated region
        $region13: #{tpu_custom_call.1} parent=11 // pred_check
          %p282 = pneg %p94
        $region14: #{tpu_custom_call.1} parent=11 // pred_check_branch
          %284 = sbr.rel (%p282) target = $region16
        $region15: #{tpu_custom_call.1} parent=11 // pred_region
          _
        $region16: #{tpu_custom_call.1} parent=11 // pred_fallthru
          _
        // Predicated region
        $region17: #{tpu_custom_call.1} parent=11 // pred_check
          %p285 = pneg %p115
        $region18: #{tpu_custom_call.1} parent=11 // pred_check_branch
          %287 = sbr.rel (%p285) target = $region20
        $region19: #{tpu_custom_call.1} parent=11 // pred_region
          _
        $region20: #{tpu_custom_call.1} parent=11 // pred_fallthru
          _
        // Predicated region
        $region21: #{tpu_custom_call.1} parent=11 // pred_check
          %p288 = pneg %p136
        $region22: #{tpu_custom_call.1} parent=11 // pred_check_branch
          %290 = sbr.rel (%p288) target = $region24
        $region23: #{tpu_custom_call.1} parent=11 // pred_region
          _
        $region24: #{tpu_custom_call.1} parent=11 // pred_fallthru
          _
        // Predicated region
        $region25: #{tpu_custom_call.1} parent=11 // pred_check
          %p291 = pneg %p157
        $region26: #{tpu_custom_call.1} parent=11 // pred_check_branch
          %293 = sbr.rel (%p291) target = $region28
        $region27: #{tpu_custom_call.1} parent=11 // pred_region
          _
        $region28: #{tpu_custom_call.1} parent=11 // pred_fallthru
          _
        // Predicated region
        $region29: #{tpu_custom_call.1} parent=11 // pred_check
          %p294 = pneg %p178
        $region30: #{tpu_custom_call.1} parent=11 // pred_check_branch
          %296 = sbr.rel (%p294) target = $region32
        $region31: #{tpu_custom_call.1} parent=11 // pred_region
          _
        $region32: #{tpu_custom_call.1} parent=11 // pred_fallthru
          _
        // Predicated region
        $region33: #{tpu_custom_call.1} parent=11 // pred_check
          %p297 = pneg %p199
        $region34: #{tpu_custom_call.1} parent=11 // pred_check_branch
          %299 = sbr.rel (%p297) target = $region36
        $region35: #{tpu_custom_call.1} parent=11 // pred_region
          _
        $region36: #{tpu_custom_call.1} parent=11 // pred_fallthru
          _
        // Predicated region
        $region37: #{tpu_custom_call.1} parent=11 // pred_check
          %p300 = pneg %p220
        $region38: #{tpu_custom_call.1} parent=11 // pred_check_branch
          %302 = sbr.rel (%p300) target = $region40
        $region39: #{tpu_custom_call.1} parent=11 // pred_region
          _
        $region40: #{tpu_custom_call.1} parent=11 // pred_fallthru
          _
        // Predicated region
        $region41: #{tpu_custom_call.1} parent=11 // pred_check
          %p303 = pneg %p241
        $region42: #{tpu_custom_call.1} parent=11 // pred_check_branch
          %305 = sbr.rel (%p303) target = $region44
        $region43: #{tpu_custom_call.1} parent=11 // pred_region
          _
        $region44: #{tpu_custom_call.1} parent=11 // pred_fallthru
          _
      $region12: #{tpu_custom_call.1} parent=5 // pred_fallthru
        _
      %p306 = scmp.lt.s32.totalorder %s21, 2
      // Predicated region
      $region45: #{tpu_custom_call.1} parent=5 // pred_check
        %p307 = pneg %p306
      $region46: #{tpu_custom_call.1} parent=5 // pred_check_branch
        %309 = sbr.rel (%p307) target = $region48
      $region47: #{tpu_custom_call.1} parent=5 // pred_region
        // Predicated region
        $region49: #{tpu_custom_call.1} parent=47 // pred_check
          %p310 = pneg %p41
        $region50: #{tpu_custom_call.1} parent=47 // pred_check_branch
          %312 = sbr.rel (%p310) target = $region52
        $region51: #{tpu_custom_call.1} parent=47 // pred_region
          %s313 = smul.u32 4, %s21
          %p314 = scmp.lt.s32.totalorder %s313, 7
          %s315 = scalar_select %p314, %s313, 7
          %s316 = scalar_lea.vmem %s0, %s315
          %s317 = smul.u32 4, %s21
        $region52: #{tpu_custom_call.1} parent=47 // pred_fallthru
          _
        // Predicated region
        $region53: #{tpu_custom_call.1} parent=47 // pred_check
          %p318 = pneg %p67
        $region54: #{tpu_custom_call.1} parent=47 // pred_check_branch
          %320 = sbr.rel (%p318) target = $region56
        $region55: #{tpu_custom_call.1} parent=47 // pred_region
          %s321 = smul.u32 4, %s21
          %p322 = scmp.lt.s32.totalorder %s321, 7
          %s323 = scalar_select %p322, %s321, 7
          %s324 = scalar_lea.vmem %s1, %s323
          %s325 = smul.u32 4, %s21
        $region56: #{tpu_custom_call.1} parent=47 // pred_fallthru
          _
      $region48: #{tpu_custom_call.1} parent=5 // pred_fallthru
        _
      %p326 = scmp.le.s32.totalorder 1, %s21
      %p327 = scmp.lt.s32.totalorder %s21, 3
      %p328 = pnand %p326, %p327
      %p329 = pneg %p328
      // Predicated region
      $region57: #{tpu_custom_call.1} parent=5 // pred_check
        _
      $region58: #{tpu_custom_call.1} parent=5 // pred_check_branch
        %331 = sbr.rel (%p328) target = $region60
      $region59: #{tpu_custom_call.1} parent=5 // pred_region
        %s332 = ssub.s32 %s21, 1
        %s333 = smul.u32 4, %s26
        %p334 = scmp.lt.s32.totalorder %s333, 7
        %s335 = scalar_select %p334, %s333, 7
        %s336 = scalar_lea.vmem %s0, %s335
        %p337 = pneg %p47
        %p338 = pneg %p44
        %s339 = smul.u32 4, %s26
        %p340 = scmp.lt.s32.totalorder %s339, 7
        %s341 = scalar_select %p340, %s339, 7
        %s342 = scalar_lea.vmem %s1, %s341
        %p343 = pneg %p73
        %p344 = pneg %p70
        %p345 = pneg %p94
        %p346 = pneg %p91
        %p347 = pneg %p115
        %p348 = pneg %p112
        %p349 = pneg %p136
        %p350 = pneg %p133
        %p351 = pneg %p157
        %p352 = pneg %p154
        %p353 = pneg %p178
        %p354 = pneg %p175
        %p355 = pneg %p199
        %p356 = pneg %p196
        %p357 = pneg %p220
        %p358 = pneg %p217
        %p359 = pneg %p241
        %p360 = pneg %p238
        %p361 = pneg %p267
        %p362 = pneg %p264
        %s363 = sand.u32 %s254, 1
        %s364 = scalar_lea.sflag [#allocation4], %s363
        %s365 = sand.u32 %s254, 1
        %s366 = smul.addr %s365, 4
        %s367 = scalar_lea.vmem [#allocation3], %s366
        %s368 = smul.u32 4, %s26
        %p369 = scmp.lt.s32.totalorder %s368, 7
        %s370 = scalar_select %p369, %s368, 7
        %s371 = scalar_lea.vmem %s0, %s370
        %s372 = smul.u32 4, %s26
        %s373 = smul.u32 4, %s26
        %p374 = scmp.lt.s32.totalorder %s373, 7
        %s375 = scalar_select %p374, %s373, 7
        %s376 = scalar_lea.vmem %s1, %s375
        %s377 = smul.u32 4, %s26
        %s378 = smul.u32 4, %s26
        %v379 = vld [vmem:[%s371] sm:$0xf]
        %v380 = vld [vmem:[%s376] sm:$0xf]
        %v381 = vld [vmem:[%s4] sm:$0xff]
        %v382 = vld [vmem:[%s4 + $0x8] sm:$0xff]
        %v383 = vld [vmem:[%s4 + $0x10] sm:$0xff]
        %v384 = vld [vmem:[%s4 + $0x18] sm:$0xff]
        %v385 = vld [vmem:[%s4 + $0x20] sm:$0xff]
        %v386 = vld [vmem:[%s4 + $0x28] sm:$0xff]
        %v387 = vld [vmem:[%s4 + $0x30] sm:$0xff]
        %v388 = vld [vmem:[%s4 + $0x38] sm:$0xff]
        %v389 = vld [vmem:[%s6] sm:$0xff]
        %v390 = vld [vmem:[%s6 + $0x8] sm:$0xff]
        %v391 = vld [vmem:[%s6 + $0x10] sm:$0xff]
        %v392 = vld [vmem:[%s6 + $0x18] sm:$0xff]
        %v393 = vld [vmem:[%s6 + $0x20] sm:$0xff]
        %v394 = vld [vmem:[%s6 + $0x28] sm:$0xff]
        %v395 = vld [vmem:[%s6 + $0x30] sm:$0xff]
        %v396 = vld [vmem:[%s6 + $0x38] sm:$0xff]
        %v397 = vld [vmem:[%s8] sm:$0x1]
        %v398 = vld [vmem:[%s2] sm:$0xff]
        %v399 = vld [vmem:[%s2 + $0x8] sm:$0xff]
        %v400 = vld [vmem:[%s2 + $0x10] sm:$0xff]
        %v401 = vld [vmem:[%s2 + $0x18] sm:$0xff]
        %v402 = vld [vmem:[%s2 + $0x20] sm:$0xff]
        %v403 = vld [vmem:[%s2 + $0x28] sm:$0xff]
        %v404 = vld [vmem:[%s2 + $0x30] sm:$0xff]
        %v405 = vld [vmem:[%s2 + $0x38] sm:$0xff]
        %407 = vset.pattern.permute.xlu0 0
        %408 = vperm.xlu0 %407, %v398
        %v409 = vpop.permute.xlu0 %408
        %412 = vset.pattern.permute.xlu0 0
        %413 = vperm.xlu0 %412, %v399
        %v414 = vpop.permute.xlu0 %413
        %417 = vset.pattern.permute.xlu0 0
        %418 = vperm.xlu0 %417, %v400
        %v419 = vpop.permute.xlu0 %418
        %422 = vset.pattern.permute.xlu0 0
        %423 = vperm.xlu0 %422, %v401
        %v424 = vpop.permute.xlu0 %423
        %427 = vset.pattern.permute.xlu0 0
        %428 = vperm.xlu0 %427, %v402
        %v429 = vpop.permute.xlu0 %428
        %432 = vset.pattern.permute.xlu0 0
        %433 = vperm.xlu0 %432, %v403
        %v434 = vpop.permute.xlu0 %433
        %437 = vset.pattern.permute.xlu0 0
        %438 = vperm.xlu0 %437, %v404
        %v439 = vpop.permute.xlu0 %438
        %442 = vset.pattern.permute.xlu0 0
        %443 = vperm.xlu0 %442, %v405
        %v444 = vpop.permute.xlu0 %443
        %v447 = vlaneseq
        %v448 = vshrl.u32 %v447, 7
        %v449 = vsub.s32 0, %v448
        %v450 = vrot.slane %v379, %v449
        %v451 = vlaneseq
        %v452 = vshrl.u32 %v451, 7
        %v453 = vsub.s32 1, %v452
        %v454 = vrot.slane %v379, %v453
        %v455 = vlaneseq
        %v456 = vshrl.u32 %v455, 7
        %v457 = vsub.s32 2, %v456
        %v458 = vrot.slane %v379, %v457
        %v459 = vlaneseq
        %v460 = vshrl.u32 %v459, 7
        %v461 = vsub.s32 3, %v460
        %v462 = vrot.slane %v379, %v461
        %v467 = vmul.f32 %v409, %v450
        %v468 = vmul.f32 %v409, %v454
        %v469 = vmul.f32 %v409, %v458
        %v470 = vmul.f32 %v409, %v462
        %v471 = vmul.f32 %v414, %v450
        %v472 = vmul.f32 %v414, %v454
        %v473 = vmul.f32 %v414, %v458
        %v474 = vmul.f32 %v414, %v462
        %v475 = vmul.f32 %v419, %v450
        %v476 = vmul.f32 %v419, %v454
        %v477 = vmul.f32 %v419, %v458
        %v478 = vmul.f32 %v419, %v462
        %v479 = vmul.f32 %v424, %v450
        %v480 = vmul.f32 %v424, %v454
        %v481 = vmul.f32 %v424, %v458
        %v482 = vmul.f32 %v424, %v462
        %v483 = vmul.f32 %v429, %v450
        %v484 = vmul.f32 %v429, %v454
        %v485 = vmul.f32 %v429, %v458
        %v486 = vmul.f32 %v429, %v462
        %v487 = vmul.f32 %v434, %v450
        %v488 = vmul.f32 %v434, %v454
        %v489 = vmul.f32 %v434, %v458
        %v490 = vmul.f32 %v434, %v462
        %v491 = vmul.f32 %v439, %v450
        %v492 = vmul.f32 %v439, %v454
        %v493 = vmul.f32 %v439, %v458
        %v494 = vmul.f32 %v439, %v462
        %v495 = vmul.f32 %v444, %v450
        %v496 = vmul.f32 %v444, %v454
        %v497 = vmul.f32 %v444, %v458
        %v498 = vmul.f32 %v444, %v462
        %499 = vset.pattern.permute.xlu0 1
        %500 = vperm.xlu0 %499, %v398
        %v501 = vpop.permute.xlu0 %500
        %503 = vset.pattern.permute.xlu0 1
        %504 = vperm.xlu0 %503, %v399
        %v505 = vpop.permute.xlu0 %504
        %507 = vset.pattern.permute.xlu0 1
        %508 = vperm.xlu0 %507, %v400
        %v509 = vpop.permute.xlu0 %508
        %511 = vset.pattern.permute.xlu0 1
        %512 = vperm.xlu0 %511, %v401
        %v513 = vpop.permute.xlu0 %512
        %515 = vset.pattern.permute.xlu0 1
        %516 = vperm.xlu0 %515, %v402
        %v517 = vpop.permute.xlu0 %516
        %519 = vset.pattern.permute.xlu0 1
        %520 = vperm.xlu0 %519, %v403
        %v521 = vpop.permute.xlu0 %520
        %523 = vset.pattern.permute.xlu0 1
        %524 = vperm.xlu0 %523, %v404
        %v525 = vpop.permute.xlu0 %524
        %527 = vset.pattern.permute.xlu0 1
        %528 = vperm.xlu0 %527, %v405
        %v529 = vpop.permute.xlu0 %528
        %v532 = vlaneseq
        %v533 = vshrl.u32 %v532, 7
        %v534 = vsub.s32 0, %v533
        %v535 = vrot.slane %v380, %v534
        %v536 = vlaneseq
        %v537 = vshrl.u32 %v536, 7
        %v538 = vsub.s32 1, %v537
        %v539 = vrot.slane %v380, %v538
        %v540 = vlaneseq
        %v541 = vshrl.u32 %v540, 7
        %v542 = vsub.s32 2, %v541
        %v543 = vrot.slane %v380, %v542
        %v544 = vlaneseq
        %v545 = vshrl.u32 %v544, 7
        %v546 = vsub.s32 3, %v545
        %v547 = vrot.slane %v380, %v546
        %v552 = vmul.f32 %v501, %v535
        %v553 = vmul.f32 %v501, %v539
        %v554 = vmul.f32 %v501, %v543
        %v555 = vmul.f32 %v501, %v547
        %v556 = vmul.f32 %v505, %v535
        %v557 = vmul.f32 %v505, %v539
        %v558 = vmul.f32 %v505, %v543
        %v559 = vmul.f32 %v505, %v547
        %v560 = vmul.f32 %v509, %v535
        %v561 = vmul.f32 %v509, %v539
        %v562 = vmul.f32 %v509, %v543
        %v563 = vmul.f32 %v509, %v547
        %v564 = vmul.f32 %v513, %v535
        %v565 = vmul.f32 %v513, %v539
        %v566 = vmul.f32 %v513, %v543
        %v567 = vmul.f32 %v513, %v547
        %v568 = vmul.f32 %v517, %v535
        %v569 = vmul.f32 %v517, %v539
        %v570 = vmul.f32 %v517, %v543
        %v571 = vmul.f32 %v517, %v547
        %v572 = vmul.f32 %v521, %v535
        %v573 = vmul.f32 %v521, %v539
        %v574 = vmul.f32 %v521, %v543
        %v575 = vmul.f32 %v521, %v547
        %v576 = vmul.f32 %v525, %v535
        %v577 = vmul.f32 %v525, %v539
        %v578 = vmul.f32 %v525, %v543
        %v579 = vmul.f32 %v525, %v547
        %v580 = vmul.f32 %v529, %v535
        %v581 = vmul.f32 %v529, %v539
        %v582 = vmul.f32 %v529, %v543
        %v583 = vmul.f32 %v529, %v547
        %v584 = vadd.f32 %v467, %v552
        %v585 = vadd.f32 %v468, %v553
        %v586 = vadd.f32 %v469, %v554
        %v587 = vadd.f32 %v470, %v555
        %v588 = vadd.f32 %v471, %v556
        %v589 = vadd.f32 %v472, %v557
        %v590 = vadd.f32 %v473, %v558
        %v591 = vadd.f32 %v474, %v559
        %v592 = vadd.f32 %v475, %v560
        %v593 = vadd.f32 %v476, %v561
        %v594 = vadd.f32 %v477, %v562
        %v595 = vadd.f32 %v478, %v563
        %v596 = vadd.f32 %v479, %v564
        %v597 = vadd.f32 %v480, %v565
        %v598 = vadd.f32 %v481, %v566
        %v599 = vadd.f32 %v482, %v567
        %v600 = vadd.f32 %v483, %v568
        %v601 = vadd.f32 %v484, %v569
        %v602 = vadd.f32 %v485, %v570
        %v603 = vadd.f32 %v486, %v571
        %v604 = vadd.f32 %v487, %v572
        %v605 = vadd.f32 %v488, %v573
        %v606 = vadd.f32 %v489, %v574
        %v607 = vadd.f32 %v490, %v575
        %v608 = vadd.f32 %v491, %v576
        %v609 = vadd.f32 %v492, %v577
        %v610 = vadd.f32 %v493, %v578
        %v611 = vadd.f32 %v494, %v579
        %v612 = vadd.f32 %v495, %v580
        %v613 = vadd.f32 %v496, %v581
        %v614 = vadd.f32 %v497, %v582
        %v615 = vadd.f32 %v498, %v583
        %v616 = vld [vmem:[%s3] sm:$0xff]
        %v617 = vld [vmem:[%s3 + $0x8] sm:$0xff]
        %v618 = vld [vmem:[%s3 + $0x10] sm:$0xff]
        %v619 = vld [vmem:[%s3 + $0x18] sm:$0xff]
        %v620 = vld [vmem:[%s3 + $0x20] sm:$0xff]
        %v621 = vld [vmem:[%s3 + $0x28] sm:$0xff]
        %v622 = vld [vmem:[%s3 + $0x30] sm:$0xff]
        %v623 = vld [vmem:[%s3 + $0x38] sm:$0xff]
        %625 = vset.pattern.permute.xlu0 0
        %626 = vperm.xlu0 %625, %v616
        %v627 = vpop.permute.xlu0 %626
        %630 = vset.pattern.permute.xlu0 0
        %631 = vperm.xlu0 %630, %v617
        %v632 = vpop.permute.xlu0 %631
        %635 = vset.pattern.permute.xlu0 0
        %636 = vperm.xlu0 %635, %v618
        %v637 = vpop.permute.xlu0 %636
        %640 = vset.pattern.permute.xlu0 0
        %641 = vperm.xlu0 %640, %v619
        %v642 = vpop.permute.xlu0 %641
        %645 = vset.pattern.permute.xlu0 0
        %646 = vperm.xlu0 %645, %v620
        %v647 = vpop.permute.xlu0 %646
        %650 = vset.pattern.permute.xlu0 0
        %651 = vperm.xlu0 %650, %v621
        %v652 = vpop.permute.xlu0 %651
        %655 = vset.pattern.permute.xlu0 0
        %656 = vperm.xlu0 %655, %v622
        %v657 = vpop.permute.xlu0 %656
        %660 = vset.pattern.permute.xlu0 0
        %661 = vperm.xlu0 %660, %v623
        %v662 = vpop.permute.xlu0 %661
        %v664 = vadd.f32 %v584, %v627
        %v665 = vadd.f32 %v585, %v627
        %v666 = vadd.f32 %v586, %v627
        %v667 = vadd.f32 %v587, %v627
        %v668 = vadd.f32 %v588, %v632
        %v669 = vadd.f32 %v589, %v632
        %v670 = vadd.f32 %v590, %v632
        %v671 = vadd.f32 %v591, %v632
        %v672 = vadd.f32 %v592, %v637
        %v673 = vadd.f32 %v593, %v637
        %v674 = vadd.f32 %v594, %v637
        %v675 = vadd.f32 %v595, %v637
        %v676 = vadd.f32 %v596, %v642
        %v677 = vadd.f32 %v597, %v642
        %v678 = vadd.f32 %v598, %v642
        %v679 = vadd.f32 %v599, %v642
        %v680 = vadd.f32 %v600, %v647
        %v681 = vadd.f32 %v601, %v647
        %v682 = vadd.f32 %v602, %v647
        %v683 = vadd.f32 %v603, %v647
        %v684 = vadd.f32 %v604, %v652
        %v685 = vadd.f32 %v605, %v652
        %v686 = vadd.f32 %v606, %v652
        %v687 = vadd.f32 %v607, %v652
        %v688 = vadd.f32 %v608, %v657
        %v689 = vadd.f32 %v609, %v657
        %v690 = vadd.f32 %v610, %v657
        %v691 = vadd.f32 %v611, %v657
        %v692 = vadd.f32 %v612, %v662
        %v693 = vadd.f32 %v613, %v662
        %v694 = vadd.f32 %v614, %v662
        %v695 = vadd.f32 %v615, %v662
        %v696 = vtanh.pop %v664
        %v697 = vtanh.pop %v665
        %v698 = vtanh.pop %v666
        %v699 = vtanh.pop %v667
        %v700 = vtanh.pop %v668
        %v701 = vtanh.pop %v669
        %v702 = vtanh.pop %v670
        %v703 = vtanh.pop %v671
        %v704 = vtanh.pop %v672
        %v705 = vtanh.pop %v673
        %v706 = vtanh.pop %v674
        %v707 = vtanh.pop %v675
        %v708 = vtanh.pop %v676
        %v709 = vtanh.pop %v677
        %v710 = vtanh.pop %v678
        %v711 = vtanh.pop %v679
        %v712 = vtanh.pop %v680
        %v713 = vtanh.pop %v681
        %v714 = vtanh.pop %v682
        %v715 = vtanh.pop %v683
        %v716 = vtanh.pop %v684
        %v717 = vtanh.pop %v685
        %v718 = vtanh.pop %v686
        %v719 = vtanh.pop %v687
        %v720 = vtanh.pop %v688
        %v721 = vtanh.pop %v689
        %v722 = vtanh.pop %v690
        %v723 = vtanh.pop %v691
        %v724 = vtanh.pop %v692
        %v725 = vtanh.pop %v693
        %v726 = vtanh.pop %v694
        %v727 = vtanh.pop %v695
        %v728 = vld [vmem:[%s5] sm:$0xff]
        %v729 = vld [vmem:[%s5 + $0x8] sm:$0xff]
        %v730 = vld [vmem:[%s5 + $0x10] sm:$0xff]
        %v731 = vld [vmem:[%s5 + $0x18] sm:$0xff]
        %v732 = vld [vmem:[%s5 + $0x20] sm:$0xff]
        %v733 = vld [vmem:[%s5 + $0x28] sm:$0xff]
        %v734 = vld [vmem:[%s5 + $0x30] sm:$0xff]
        %v735 = vld [vmem:[%s5 + $0x38] sm:$0xff]
        %737 = vset.pattern.permute.xlu0 0
        %738 = vperm.xlu0 %737, %v728
        %v739 = vpop.permute.xlu0 %738
        %742 = vset.pattern.permute.xlu0 0
        %743 = vperm.xlu0 %742, %v729
        %v744 = vpop.permute.xlu0 %743
        %747 = vset.pattern.permute.xlu0 0
        %748 = vperm.xlu0 %747, %v730
        %v749 = vpop.permute.xlu0 %748
        %752 = vset.pattern.permute.xlu0 0
        %753 = vperm.xlu0 %752, %v731
        %v754 = vpop.permute.xlu0 %753
        %757 = vset.pattern.permute.xlu0 0
        %758 = vperm.xlu0 %757, %v732
        %v759 = vpop.permute.xlu0 %758
        %762 = vset.pattern.permute.xlu0 0
        %763 = vperm.xlu0 %762, %v733
        %v764 = vpop.permute.xlu0 %763
        %767 = vset.pattern.permute.xlu0 0
        %768 = vperm.xlu0 %767, %v734
        %v769 = vpop.permute.xlu0 %768
        %772 = vset.pattern.permute.xlu0 0
        %773 = vperm.xlu0 %772, %v735
        %v774 = vpop.permute.xlu0 %773
        %vm776 = vcmask 523264
        %v778 = vsel %vm776, %v381, 0
        %v781 = vsel %vm776, %v382, 0
        %v784 = vsel %vm776, %v383, 0
        %v787 = vsel %vm776, %v384, 0
        %v790 = vsel %vm776, %v385, 0
        %v793 = vsel %vm776, %v386, 0
        %v796 = vsel %vm776, %v387, 0
        %v799 = vsel %vm776, %v388, 0
        %801 = vmatprep.subr.mxu0 %v697
        %802 = vmatpush1.msra.mxu0 %v696
        %803 = vmatprep.subr.mxu0 %v701
        %804 = vmatpush1.msra.mxu0 %v700
        %805 = vmatprep.subr.mxu0 %v705
        %806 = vmatpush1.msra.mxu0 %v704
        %807 = vmatprep.subr.mxu0 %v709
        %808 = vmatpush1.msra.mxu0 %v708
        %809 = vmatprep.subr.mxu0 %v713
        %810 = vmatpush1.msra.mxu0 %v712
        %811 = vmatprep.subr.mxu0 %v717
        %812 = vmatpush1.msra.mxu0 %v716
        %813 = vmatprep.subr.mxu0 %v721
        %814 = vmatpush1.msra.mxu0 %v720
        %815 = vmatprep.subr.mxu0 %v725
        %816 = vmatpush1.msra.mxu0 %v724
        %817 = vmatprep.subr.mxu0 0.0
        %818 = vmatpush1.msra.mxu0 0.0
        %819 = vmatprep.subr.mxu0 0.0
        %820 = vmatpush1.msra.mxu0 0.0
        %821 = vmatprep.subr.mxu0 0.0
        %822 = vmatpush1.msra.mxu0 0.0
        %823 = vmatprep.subr.mxu0 0.0
        %824 = vmatpush1.msra.mxu0 0.0
        %825 = vmatprep.subr.mxu0 0.0
        %826 = vmatpush1.msra.mxu0 0.0
        %827 = vmatprep.subr.mxu0 0.0
        %828 = vmatpush1.msra.mxu0 0.0
        %829 = vmatprep.subr.mxu0 0.0
        %830 = vmatpush1.msra.mxu0 0.0
        %831 = vmatprep.subr.mxu0 0.0
        %832 = vmatpush1.msra.mxu0 0.0
        %833 = vmatprep.subr.mxu0 0.0
        %834 = vmatpush1.msra.mxu0 0.0
        %835 = vmatprep.subr.mxu0 0.0
        %836 = vmatpush1.msra.mxu0 0.0
        %837 = vmatprep.subr.mxu0 0.0
        %838 = vmatpush1.msra.mxu0 0.0
        %839 = vmatprep.subr.mxu0 0.0
        %840 = vmatpush1.msra.mxu0 0.0
        %841 = vmatprep.subr.mxu0 0.0
        %842 = vmatpush1.msra.mxu0 0.0
        %843 = vmatprep.subr.mxu0 0.0
        %844 = vmatpush1.msra.mxu0 0.0
        %845 = vmatprep.subr.mxu0 0.0
        %846 = vmatpush1.msra.mxu0 0.0
        %847 = vmatprep.subr.mxu0 0.0
        %848 = vmatpush1.msra.mxu0 0.0
        %849 = vmatprep.subr.mxu0 0.0
        %850 = vmatpush1.msra.mxu0 0.0
        %851 = vmatprep.subr.mxu0 0.0
        %852 = vmatpush1.msra.mxu0 0.0
        %853 = vmatprep.subr.mxu0 0.0
        %854 = vmatpush1.msra.mxu0 0.0
        %855 = vmatprep.subr.mxu0 0.0
        %856 = vmatpush1.msra.mxu0 0.0
        %857 = vmatprep.subr.mxu0 0.0
        %858 = vmatpush1.msra.mxu0 0.0
        %859 = vmatprep.subr.mxu0 0.0
        %860 = vmatpush1.msra.mxu0 0.0
        %861 = vmatprep.subr.mxu0 0.0
        %862 = vmatpush1.msra.mxu0 0.0
        %863 = vmatprep.subr.mxu0 0.0
        %864 = vmatpush1.msra.mxu0 0.0
        %865 = vmatprep.mubr.f32.mxu0 0.0
        %866 = vmatmul.mubr.f32.gmra.mrb[0].mxu0 %v778
        %v867 = vpop.f32.mrb[0].mxu0
        %v868 = vadd.f32 %v739, %v867
        %v869 = vpop.f32.mrb[0].mxu0
        %v870 = vadd.f32 %v739, %v869
        %871 = vmatprep.mubr.f32.mxu0 0.0
        %872 = vmatmul.mubr.f32.gmra.mrb[0].mxu0 %v781
        %v873 = vpop.f32.mrb[0].mxu0
        %v874 = vadd.f32 %v744, %v873
        %v875 = vpop.f32.mrb[0].mxu0
        %v876 = vadd.f32 %v744, %v875
        %877 = vmatprep.mubr.f32.mxu0 0.0
        %878 = vmatmul.mubr.f32.gmra.mrb[0].mxu0 %v784
        %v879 = vpop.f32.mrb[0].mxu0
        %v880 = vadd.f32 %v749, %v879
        %v881 = vpop.f32.mrb[0].mxu0
        %v882 = vadd.f32 %v749, %v881
        %883 = vmatprep.mubr.f32.mxu0 0.0
        %884 = vmatmul.mubr.f32.gmra.mrb[0].mxu0 %v787
        %v885 = vpop.f32.mrb[0].mxu0
        %v886 = vadd.f32 %v754, %v885
        %v887 = vpop.f32.mrb[0].mxu0
        %v888 = vadd.f32 %v754, %v887
        %889 = vmatprep.mubr.f32.mxu0 0.0
        %890 = vmatmul.mubr.f32.gmra.mrb[0].mxu0 %v790
        %v891 = vpop.f32.mrb[0].mxu0
        %v892 = vadd.f32 %v759, %v891
        %v893 = vpop.f32.mrb[0].mxu0
        %v894 = vadd.f32 %v759, %v893
        %895 = vmatprep.mubr.f32.mxu0 0.0
        %896 = vmatmul.mubr.f32.gmra.mrb[0].mxu0 %v793
        %v897 = vpop.f32.mrb[0].mxu0
        %v898 = vadd.f32 %v764, %v897
        %v899 = vpop.f32.mrb[0].mxu0
        %v900 = vadd.f32 %v764, %v899
        %901 = vmatprep.mubr.f32.mxu0 0.0
        %902 = vmatmul.mubr.f32.gmra.mrb[0].mxu0 %v796
        %v903 = vpop.f32.mrb[0].mxu0
        %v904 = vadd.f32 %v769, %v903
        %v905 = vpop.f32.mrb[0].mxu0
        %v906 = vadd.f32 %v769, %v905
        %907 = vmatprep.mubr.f32.mxu0 0.0
        %908 = vmatmul.mubr.f32.gmra.mrb[0].mxu0 %v799
        %v909 = vpop.f32.mrb[0].mxu0
        %v910 = vadd.f32 %v774, %v909
        %v911 = vpop.f32.mrb[0].mxu0
        %v912 = vadd.f32 %v774, %v911
        %913 = vdwg.mxu0
        %914 = vmatprep.subr.mxu0 %v699
        %915 = vmatpush1.msra.mxu0 %v698
        %916 = vmatprep.subr.mxu0 %v703
        %917 = vmatpush1.msra.mxu0 %v702
        %918 = vmatprep.subr.mxu0 %v707
        %919 = vmatpush1.msra.mxu0 %v706
        %920 = vmatprep.subr.mxu0 %v711
        %921 = vmatpush1.msra.mxu0 %v710
        %922 = vmatprep.subr.mxu0 %v715
        %923 = vmatpush1.msra.mxu0 %v714
        %924 = vmatprep.subr.mxu0 %v719
        %925 = vmatpush1.msra.mxu0 %v718
        %926 = vmatprep.subr.mxu0 %v723
        %927 = vmatpush1.msra.mxu0 %v722
        %928 = vmatprep.subr.mxu0 %v727
        %929 = vmatpush1.msra.mxu0 %v726
        %930 = vmatprep.subr.mxu0 0.0
        %931 = vmatpush1.msra.mxu0 0.0
        %932 = vmatprep.subr.mxu0 0.0
        %933 = vmatpush1.msra.mxu0 0.0
        %934 = vmatprep.subr.mxu0 0.0
        %935 = vmatpush1.msra.mxu0 0.0
        %936 = vmatprep.subr.mxu0 0.0
        %937 = vmatpush1.msra.mxu0 0.0
        %938 = vmatprep.subr.mxu0 0.0
        %939 = vmatpush1.msra.mxu0 0.0
        %940 = vmatprep.subr.mxu0 0.0
        %941 = vmatpush1.msra.mxu0 0.0
        %942 = vmatprep.subr.mxu0 0.0
        %943 = vmatpush1.msra.mxu0 0.0
        %944 = vmatprep.subr.mxu0 0.0
        %945 = vmatpush1.msra.mxu0 0.0
        %946 = vmatprep.subr.mxu0 0.0
        %947 = vmatpush1.msra.mxu0 0.0
        %948 = vmatprep.subr.mxu0 0.0
        %949 = vmatpush1.msra.mxu0 0.0
        %950 = vmatprep.subr.mxu0 0.0
        %951 = vmatpush1.msra.mxu0 0.0
        %952 = vmatprep.subr.mxu0 0.0
        %953 = vmatpush1.msra.mxu0 0.0
        %954 = vmatprep.subr.mxu0 0.0
        %955 = vmatpush1.msra.mxu0 0.0
        %956 = vmatprep.subr.mxu0 0.0
        %957 = vmatpush1.msra.mxu0 0.0
        %958 = vmatprep.subr.mxu0 0.0
        %959 = vmatpush1.msra.mxu0 0.0
        %960 = vmatprep.subr.mxu0 0.0
        %961 = vmatpush1.msra.mxu0 0.0
        %962 = vmatprep.subr.mxu0 0.0
        %963 = vmatpush1.msra.mxu0 0.0
        %964 = vmatprep.subr.mxu0 0.0
        %965 = vmatpush1.msra.mxu0 0.0
        %966 = vmatprep.subr.mxu0 0.0
        %967 = vmatpush1.msra.mxu0 0.0
        %968 = vmatprep.subr.mxu0 0.0
        %969 = vmatpush1.msra.mxu0 0.0
        %970 = vmatprep.subr.mxu0 0.0
        %971 = vmatpush1.msra.mxu0 0.0
        %972 = vmatprep.subr.mxu0 0.0
        %973 = vmatpush1.msra.mxu0 0.0
        %974 = vmatprep.subr.mxu0 0.0
        %975 = vmatpush1.msra.mxu0 0.0
        %976 = vmatprep.subr.mxu0 0.0
        %977 = vmatpush1.msra.mxu0 0.0
        %978 = vmatprep.mubr.f32.mxu0 0.0
        %979 = vmatmul.mubr.f32.gmra.mrb[0].mxu0 %v778
        %v980 = vpop.f32.mrb[0].mxu0
        %v981 = vadd.f32 %v739, %v980
        %v982 = vpop.f32.mrb[0].mxu0
        %v983 = vadd.f32 %v739, %v982
        %984 = vmatprep.mubr.f32.mxu0 0.0
        %985 = vmatmul.mubr.f32.gmra.mrb[0].mxu0 %v781
        %v986 = vpop.f32.mrb[0].mxu0
        %v987 = vadd.f32 %v744, %v986
        %v988 = vpop.f32.mrb[0].mxu0
        %v989 = vadd.f32 %v744, %v988
        %990 = vmatprep.mubr.f32.mxu0 0.0
        %991 = vmatmul.mubr.f32.gmra.mrb[0].mxu0 %v784
        %v992 = vpop.f32.mrb[0].mxu0
        %v993 = vadd.f32 %v749, %v992
        %v994 = vpop.f32.mrb[0].mxu0
        %v995 = vadd.f32 %v749, %v994
        %996 = vmatprep.mubr.f32.mxu0 0.0
        %997 = vmatmul.mubr.f32.gmra.mrb[0].mxu0 %v787
        %v998 = vpop.f32.mrb[0].mxu0
        %v999 = vadd.f32 %v754, %v998
        %v1000 = vpop.f32.mrb[0].mxu0
        %v1001 = vadd.f32 %v754, %v1000
        %1002 = vmatprep.mubr.f32.mxu0 0.0
        %1003 = vmatmul.mubr.f32.gmra.mrb[0].mxu0 %v790
        %v1004 = vpop.f32.mrb[0].mxu0
        %v1005 = vadd.f32 %v759, %v1004
        %v1006 = vpop.f32.mrb[0].mxu0
        %v1007 = vadd.f32 %v759, %v1006
        %1008 = vmatprep.mubr.f32.mxu0 0.0
        %1009 = vmatmul.mubr.f32.gmra.mrb[0].mxu0 %v793
        %v1010 = vpop.f32.mrb[0].mxu0
        %v1011 = vadd.f32 %v764, %v1010
        %v1012 = vpop.f32.mrb[0].mxu0
        %v1013 = vadd.f32 %v764, %v1012
        %1014 = vmatprep.mubr.f32.mxu0 0.0
        %1015 = vmatmul.mubr.f32.gmra.mrb[0].mxu0 %v796
        %v1016 = vpop.f32.mrb[0].mxu0
        %v1017 = vadd.f32 %v769, %v1016
        %v1018 = vpop.f32.mrb[0].mxu0
        %v1019 = vadd.f32 %v769, %v1018
        %1020 = vmatprep.mubr.f32.mxu0 0.0
        %1021 = vmatmul.mubr.f32.gmra.mrb[0].mxu0 %v799
        %v1022 = vpop.f32.mrb[0].mxu0
        %v1023 = vadd.f32 %v774, %v1022
        %v1024 = vpop.f32.mrb[0].mxu0
        %v1025 = vadd.f32 %v774, %v1024
        %1026 = vdwg.mxu0
        %v1027 = vtanh.pop %v868
        %v1028 = vtanh.pop %v870
        %v1029 = vtanh.pop %v981
        %v1030 = vtanh.pop %v983
        %v1031 = vtanh.pop %v874
        %v1032 = vtanh.pop %v876
        %v1033 = vtanh.pop %v987
        %v1034 = vtanh.pop %v989
        %v1035 = vtanh.pop %v880
        %v1036 = vtanh.pop %v882
        %v1037 = vtanh.pop %v993
        %v1038 = vtanh.pop %v995
        %v1039 = vtanh.pop %v886
        %v1040 = vtanh.pop %v888
        %v1041 = vtanh.pop %v999
        %v1042 = vtanh.pop %v1001
        %v1043 = vtanh.pop %v892
        %v1044 = vtanh.pop %v894
        %v1045 = vtanh.pop %v1005
        %v1046 = vtanh.pop %v1007
        %v1047 = vtanh.pop %v898
        %v1048 = vtanh.pop %v900
        %v1049 = vtanh.pop %v1011
        %v1050 = vtanh.pop %v1013
        %v1051 = vtanh.pop %v904
        %v1052 = vtanh.pop %v906
        %v1053 = vtanh.pop %v1017
        %v1054 = vtanh.pop %v1019
        %v1055 = vtanh.pop %v910
        %v1056 = vtanh.pop %v912
        %v1057 = vtanh.pop %v1023
        %v1058 = vtanh.pop %v1025
        %v1059 = vld [vmem:[%s7] sm:$0xff]
        %v1060 = vld [vmem:[%s7 + $0x8] sm:$0xff]
        %v1061 = vld [vmem:[%s7 + $0x10] sm:$0xff]
        %v1062 = vld [vmem:[%s7 + $0x18] sm:$0xff]
        %v1063 = vld [vmem:[%s7 + $0x20] sm:$0xff]
        %v1064 = vld [vmem:[%s7 + $0x28] sm:$0xff]
        %v1065 = vld [vmem:[%s7 + $0x30] sm:$0xff]
        %v1066 = vld [vmem:[%s7 + $0x38] sm:$0xff]
        %1068 = vset.pattern.permute.xlu0 0
        %1069 = vperm.xlu0 %1068, %v1059
        %v1070 = vpop.permute.xlu0 %1069
        %1073 = vset.pattern.permute.xlu0 0
        %1074 = vperm.xlu0 %1073, %v1060
        %v1075 = vpop.permute.xlu0 %1074
        %1078 = vset.pattern.permute.xlu0 0
        %1079 = vperm.xlu0 %1078, %v1061
        %v1080 = vpop.permute.xlu0 %1079
        %1083 = vset.pattern.permute.xlu0 0
        %1084 = vperm.xlu0 %1083, %v1062
        %v1085 = vpop.permute.xlu0 %1084
        %1088 = vset.pattern.permute.xlu0 0
        %1089 = vperm.xlu0 %1088, %v1063
        %v1090 = vpop.permute.xlu0 %1089
        %1093 = vset.pattern.permute.xlu0 0
        %1094 = vperm.xlu0 %1093, %v1064
        %v1095 = vpop.permute.xlu0 %1094
        %1098 = vset.pattern.permute.xlu0 0
        %1099 = vperm.xlu0 %1098, %v1065
        %v1100 = vpop.permute.xlu0 %1099
        %1103 = vset.pattern.permute.xlu0 0
        %1104 = vperm.xlu0 %1103, %v1066
        %v1105 = vpop.permute.xlu0 %1104
        %v1108 = vsel %vm776, %v389, 0
        %v1111 = vsel %vm776, %v390, 0
        %v1114 = vsel %vm776, %v391, 0
        %v1117 = vsel %vm776, %v392, 0
        %v1120 = vsel %vm776, %v393, 0
        %v1123 = vsel %vm776, %v394, 0
        %v1126 = vsel %vm776, %v395, 0
        %v1129 = vsel %vm776, %v396, 0
        %1131 = vmatprep.subr.mxu0 %v1028
        %1132 = vmatpush1.msra.mxu0 %v1027
        %1133 = vmatprep.subr.mxu0 %v1032
        %1134 = vmatpush1.msra.mxu0 %v1031
        %1135 = vmatprep.subr.mxu0 %v1036
        %1136 = vmatpush1.msra.mxu0 %v1035
        %1137 = vmatprep.subr.mxu0 %v1040
        %1138 = vmatpush1.msra.mxu0 %v1039
        %1139 = vmatprep.subr.mxu0 %v1044
        %1140 = vmatpush1.msra.mxu0 %v1043
        %1141 = vmatprep.subr.mxu0 %v1048
        %1142 = vmatpush1.msra.mxu0 %v1047
        %1143 = vmatprep.subr.mxu0 %v1052
        %1144 = vmatpush1.msra.mxu0 %v1051
        %1145 = vmatprep.subr.mxu0 %v1056
        %1146 = vmatpush1.msra.mxu0 %v1055
        %1147 = vmatprep.subr.mxu0 0.0
        %1148 = vmatpush1.msra.mxu0 0.0
        %1149 = vmatprep.subr.mxu0 0.0
        %1150 = vmatpush1.msra.mxu0 0.0
        %1151 = vmatprep.subr.mxu0 0.0
        %1152 = vmatpush1.msra.mxu0 0.0
        %1153 = vmatprep.subr.mxu0 0.0
        %1154 = vmatpush1.msra.mxu0 0.0
        %1155 = vmatprep.subr.mxu0 0.0
        %1156 = vmatpush1.msra.mxu0 0.0
        %1157 = vmatprep.subr.mxu0 0.0
        %1158 = vmatpush1.msra.mxu0 0.0
        %1159 = vmatprep.subr.mxu0 0.0
        %1160 = vmatpush1.msra.mxu0 0.0
        %1161 = vmatprep.subr.mxu0 0.0
        %1162 = vmatpush1.msra.mxu0 0.0
        %1163 = vmatprep.subr.mxu0 0.0
        %1164 = vmatpush1.msra.mxu0 0.0
        %1165 = vmatprep.subr.mxu0 0.0
        %1166 = vmatpush1.msra.mxu0 0.0
        %1167 = vmatprep.subr.mxu0 0.0
        %1168 = vmatpush1.msra.mxu0 0.0
        %1169 = vmatprep.subr.mxu0 0.0
        %1170 = vmatpush1.msra.mxu0 0.0
        %1171 = vmatprep.subr.mxu0 0.0
        %1172 = vmatpush1.msra.mxu0 0.0
        %1173 = vmatprep.subr.mxu0 0.0
        %1174 = vmatpush1.msra.mxu0 0.0
        %1175 = vmatprep.subr.mxu0 0.0
        %1176 = vmatpush1.msra.mxu0 0.0
        %1177 = vmatprep.subr.mxu0 0.0
        %1178 = vmatpush1.msra.mxu0 0.0
        %1179 = vmatprep.subr.mxu0 0.0
        %1180 = vmatpush1.msra.mxu0 0.0
        %1181 = vmatprep.subr.mxu0 0.0
        %1182 = vmatpush1.msra.mxu0 0.0
        %1183 = vmatprep.subr.mxu0 0.0
        %1184 = vmatpush1.msra.mxu0 0.0
        %1185 = vmatprep.subr.mxu0 0.0
        %1186 = vmatpush1.msra.mxu0 0.0
        %1187 = vmatprep.subr.mxu0 0.0
        %1188 = vmatpush1.msra.mxu0 0.0
        %1189 = vmatprep.subr.mxu0 0.0
        %1190 = vmatpush1.msra.mxu0 0.0
        %1191 = vmatprep.subr.mxu0 0.0
        %1192 = vmatpush1.msra.mxu0 0.0
        %1193 = vmatprep.subr.mxu0 0.0
        %1194 = vmatpush1.msra.mxu0 0.0
        %1195 = vmatprep.mubr.f32.mxu0 0.0
        %1196 = vmatmul.mubr.f32.gmra.mrb[0].mxu0 %v1108
        %v1197 = vpop.f32.mrb[0].mxu0
        %v1198 = vadd.f32 %v1070, %v1197
        %v1199 = vpop.f32.mrb[0].mxu0
        %v1200 = vadd.f32 %v1070, %v1199
        %1201 = vmatprep.mubr.f32.mxu0 0.0
        %1202 = vmatmul.mubr.f32.gmra.mrb[0].mxu0 %v1111
        %v1203 = vpop.f32.mrb[0].mxu0
        %v1204 = vadd.f32 %v1075, %v1203
        %v1205 = vpop.f32.mrb[0].mxu0
        %v1206 = vadd.f32 %v1075, %v1205
        %1207 = vmatprep.mubr.f32.mxu0 0.0
        %1208 = vmatmul.mubr.f32.gmra.mrb[0].mxu0 %v1114
        %v1209 = vpop.f32.mrb[0].mxu0
        %v1210 = vadd.f32 %v1080, %v1209
        %v1211 = vpop.f32.mrb[0].mxu0
        %v1212 = vadd.f32 %v1080, %v1211
        %1213 = vmatprep.mubr.f32.mxu0 0.0
        %1214 = vmatmul.mubr.f32.gmra.mrb[0].mxu0 %v1117
        %v1215 = vpop.f32.mrb[0].mxu0
        %v1216 = vadd.f32 %v1085, %v1215
        %v1217 = vpop.f32.mrb[0].mxu0
        %v1218 = vadd.f32 %v1085, %v1217
        %1219 = vmatprep.mubr.f32.mxu0 0.0
        %1220 = vmatmul.mubr.f32.gmra.mrb[0].mxu0 %v1120
        %v1221 = vpop.f32.mrb[0].mxu0
        %v1222 = vadd.f32 %v1090, %v1221
        %v1223 = vpop.f32.mrb[0].mxu0
        %v1224 = vadd.f32 %v1090, %v1223
        %1225 = vmatprep.mubr.f32.mxu0 0.0
        %1226 = vmatmul.mubr.f32.gmra.mrb[0].mxu0 %v1123
        %v1227 = vpop.f32.mrb[0].mxu0
        %v1228 = vadd.f32 %v1095, %v1227
        %v1229 = vpop.f32.mrb[0].mxu0
        %v1230 = vadd.f32 %v1095, %v1229
        %1231 = vmatprep.mubr.f32.mxu0 0.0
        %1232 = vmatmul.mubr.f32.gmra.mrb[0].mxu0 %v1126
        %v1233 = vpop.f32.mrb[0].mxu0
        %v1234 = vadd.f32 %v1100, %v1233
        %v1235 = vpop.f32.mrb[0].mxu0
        %v1236 = vadd.f32 %v1100, %v1235
        %1237 = vmatprep.mubr.f32.mxu0 0.0
        %1238 = vmatmul.mubr.f32.gmra.mrb[0].mxu0 %v1129
        %v1239 = vpop.f32.mrb[0].mxu0
        %v1240 = vadd.f32 %v1105, %v1239
        %v1241 = vpop.f32.mrb[0].mxu0
        %v1242 = vadd.f32 %v1105, %v1241
        %1243 = vdwg.mxu0
        %1244 = vmatprep.subr.mxu0 %v1030
        %1245 = vmatpush1.msra.mxu0 %v1029
        %1246 = vmatprep.subr.mxu0 %v1034
        %1247 = vmatpush1.msra.mxu0 %v1033
        %1248 = vmatprep.subr.mxu0 %v1038
        %1249 = vmatpush1.msra.mxu0 %v1037
        %1250 = vmatprep.subr.mxu0 %v1042
        %1251 = vmatpush1.msra.mxu0 %v1041
        %1252 = vmatprep.subr.mxu0 %v1046
        %1253 = vmatpush1.msra.mxu0 %v1045
        %1254 = vmatprep.subr.mxu0 %v1050
        %1255 = vmatpush1.msra.mxu0 %v1049
        %1256 = vmatprep.subr.mxu0 %v1054
        %1257 = vmatpush1.msra.mxu0 %v1053
        %1258 = vmatprep.subr.mxu0 %v1058
        %1259 = vmatpush1.msra.mxu0 %v1057
        %1260 = vmatprep.subr.mxu0 0.0
        %1261 = vmatpush1.msra.mxu0 0.0
        %1262 = vmatprep.subr.mxu0 0.0
        %1263 = vmatpush1.msra.mxu0 0.0
        %1264 = vmatprep.subr.mxu0 0.0
        %1265 = vmatpush1.msra.mxu0 0.0
        %1266 = vmatprep.subr.mxu0 0.0
        %1267 = vmatpush1.msra.mxu0 0.0
        %1268 = vmatprep.subr.mxu0 0.0
        %1269 = vmatpush1.msra.mxu0 0.0
        %1270 = vmatprep.subr.mxu0 0.0
        %1271 = vmatpush1.msra.mxu0 0.0
        %1272 = vmatprep.subr.mxu0 0.0
        %1273 = vmatpush1.msra.mxu0 0.0
        %1274 = vmatprep.subr.mxu0 0.0
        %1275 = vmatpush1.msra.mxu0 0.0
        %1276 = vmatprep.subr.mxu0 0.0
        %1277 = vmatpush1.msra.mxu0 0.0
        %1278 = vmatprep.subr.mxu0 0.0
        %1279 = vmatpush1.msra.mxu0 0.0
        %1280 = vmatprep.subr.mxu0 0.0
        %1281 = vmatpush1.msra.mxu0 0.0
        %1282 = vmatprep.subr.mxu0 0.0
        %1283 = vmatpush1.msra.mxu0 0.0
        %1284 = vmatprep.subr.mxu0 0.0
        %1285 = vmatpush1.msra.mxu0 0.0
        %1286 = vmatprep.subr.mxu0 0.0
        %1287 = vmatpush1.msra.mxu0 0.0
        %1288 = vmatprep.subr.mxu0 0.0
        %1289 = vmatpush1.msra.mxu0 0.0
        %1290 = vmatprep.subr.mxu0 0.0
        %1291 = vmatpush1.msra.mxu0 0.0
        %1292 = vmatprep.subr.mxu0 0.0
        %1293 = vmatpush1.msra.mxu0 0.0
        %1294 = vmatprep.subr.mxu0 0.0
        %1295 = vmatpush1.msra.mxu0 0.0
        %1296 = vmatprep.subr.mxu0 0.0
        %1297 = vmatpush1.msra.mxu0 0.0
        %1298 = vmatprep.subr.mxu0 0.0
        %1299 = vmatpush1.msra.mxu0 0.0
        %1300 = vmatprep.subr.mxu0 0.0
        %1301 = vmatpush1.msra.mxu0 0.0
        %1302 = vmatprep.subr.mxu0 0.0
        %1303 = vmatpush1.msra.mxu0 0.0
        %1304 = vmatprep.subr.mxu0 0.0
        %1305 = vmatpush1.msra.mxu0 0.0
        %1306 = vmatprep.subr.mxu0 0.0
        %1307 = vmatpush1.msra.mxu0 0.0
        %1308 = vmatprep.mubr.f32.mxu0 0.0
        %1309 = vmatmul.mubr.f32.gmra.mrb[0].mxu0 %v1108
        %v1310 = vpop.f32.mrb[0].mxu0
        %v1311 = vadd.f32 %v1070, %v1310
        %v1312 = vpop.f32.mrb[0].mxu0
        %v1313 = vadd.f32 %v1070, %v1312
        %1314 = vmatprep.mubr.f32.mxu0 0.0
        %1315 = vmatmul.mubr.f32.gmra.mrb[0].mxu0 %v1111
        %v1316 = vpop.f32.mrb[0].mxu0
        %v1317 = vadd.f32 %v1075, %v1316
        %v1318 = vpop.f32.mrb[0].mxu0
        %v1319 = vadd.f32 %v1075, %v1318
        %1320 = vmatprep.mubr.f32.mxu0 0.0
        %1321 = vmatmul.mubr.f32.gmra.mrb[0].mxu0 %v1114
        %v1322 = vpop.f32.mrb[0].mxu0
        %v1323 = vadd.f32 %v1080, %v1322
        %v1324 = vpop.f32.mrb[0].mxu0
        %v1325 = vadd.f32 %v1080, %v1324
        %1326 = vmatprep.mubr.f32.mxu0 0.0
        %1327 = vmatmul.mubr.f32.gmra.mrb[0].mxu0 %v1117
        %v1328 = vpop.f32.mrb[0].mxu0
        %v1329 = vadd.f32 %v1085, %v1328
        %v1330 = vpop.f32.mrb[0].mxu0
        %v1331 = vadd.f32 %v1085, %v1330
        %1332 = vmatprep.mubr.f32.mxu0 0.0
        %1333 = vmatmul.mubr.f32.gmra.mrb[0].mxu0 %v1120
        %v1334 = vpop.f32.mrb[0].mxu0
        %v1335 = vadd.f32 %v1090, %v1334
        %v1336 = vpop.f32.mrb[0].mxu0
        %v1337 = vadd.f32 %v1090, %v1336
        %1338 = vmatprep.mubr.f32.mxu0 0.0
        %1339 = vmatmul.mubr.f32.gmra.mrb[0].mxu0 %v1123
        %v1340 = vpop.f32.mrb[0].mxu0
        %v1341 = vadd.f32 %v1095, %v1340
        %v1342 = vpop.f32.mrb[0].mxu0
        %v1343 = vadd.f32 %v1095, %v1342
        %1344 = vmatprep.mubr.f32.mxu0 0.0
        %1345 = vmatmul.mubr.f32.gmra.mrb[0].mxu0 %v1126
        %v1346 = vpop.f32.mrb[0].mxu0
        %v1347 = vadd.f32 %v1100, %v1346
        %v1348 = vpop.f32.mrb[0].mxu0
        %v1349 = vadd.f32 %v1100, %v1348
        %1350 = vmatprep.mubr.f32.mxu0 0.0
        %1351 = vmatmul.mubr.f32.gmra.mrb[0].mxu0 %v1129
        %v1352 = vpop.f32.mrb[0].mxu0
        %v1353 = vadd.f32 %v1105, %v1352
        %v1354 = vpop.f32.mrb[0].mxu0
        %v1355 = vadd.f32 %v1105, %v1354
        %1356 = vdwg.mxu0
        %v1357 = vtanh.pop %v1198
        %v1358 = vtanh.pop %v1200
        %v1359 = vtanh.pop %v1311
        %v1360 = vtanh.pop %v1313
        %v1361 = vtanh.pop %v1204
        %v1362 = vtanh.pop %v1206
        %v1363 = vtanh.pop %v1317
        %v1364 = vtanh.pop %v1319
        %v1365 = vtanh.pop %v1210
        %v1366 = vtanh.pop %v1212
        %v1367 = vtanh.pop %v1323
        %v1368 = vtanh.pop %v1325
        %v1369 = vtanh.pop %v1216
        %v1370 = vtanh.pop %v1218
        %v1371 = vtanh.pop %v1329
        %v1372 = vtanh.pop %v1331
        %v1373 = vtanh.pop %v1222
        %v1374 = vtanh.pop %v1224
        %v1375 = vtanh.pop %v1335
        %v1376 = vtanh.pop %v1337
        %v1377 = vtanh.pop %v1228
        %v1378 = vtanh.pop %v1230
        %v1379 = vtanh.pop %v1341
        %v1380 = vtanh.pop %v1343
        %v1381 = vtanh.pop %v1234
        %v1382 = vtanh.pop %v1236
        %v1383 = vtanh.pop %v1347
        %v1384 = vtanh.pop %v1349
        %v1385 = vtanh.pop %v1240
        %v1386 = vtanh.pop %v1242
        %v1387 = vtanh.pop %v1353
        %v1388 = vtanh.pop %v1355
        %v1389 = vld [vmem:[#allocation2] sm:$0x1]
        %1391 = vset.pattern.permute.xlu0 0
        %1392 = vperm.xlu0 %1391, %v1389
        %v1393 = vpop.permute.xlu0 %1392
        %v1395 = vlaneseq
        %v1396 = vshrl.u32 %v1395, 7
        %v1397 = vsub.s32 0, %v1396
        %v1398 = vrot.slane %v1393, %v1397
        %v1400 = vsel %vm776, %v397, 0
        %1402 = vmatprep.subr.mxu0 %v1358
        %1403 = vmatpush1.msra.mxu0 %v1357
        %1404 = vmatprep.subr.mxu0 %v1362
        %1405 = vmatpush1.msra.mxu0 %v1361
        %1406 = vmatprep.subr.mxu0 %v1366
        %1407 = vmatpush1.msra.mxu0 %v1365
        %1408 = vmatprep.subr.mxu0 %v1370
        %1409 = vmatpush1.msra.mxu0 %v1369
        %1410 = vmatprep.subr.mxu0 %v1374
        %1411 = vmatpush1.msra.mxu0 %v1373
        %1412 = vmatprep.subr.mxu0 %v1378
        %1413 = vmatpush1.msra.mxu0 %v1377
        %1414 = vmatprep.subr.mxu0 %v1382
        %1415 = vmatpush1.msra.mxu0 %v1381
        %1416 = vmatprep.subr.mxu0 %v1386
        %1417 = vmatpush1.msra.mxu0 %v1385
        %1418 = vmatprep.subr.mxu0 0.0
        %1419 = vmatpush1.msra.mxu0 0.0
        %1420 = vmatprep.subr.mxu0 0.0
        %1421 = vmatpush1.msra.mxu0 0.0
        %1422 = vmatprep.subr.mxu0 0.0
        %1423 = vmatpush1.msra.mxu0 0.0
        %1424 = vmatprep.subr.mxu0 0.0
        %1425 = vmatpush1.msra.mxu0 0.0
        %1426 = vmatprep.subr.mxu0 0.0
        %1427 = vmatpush1.msra.mxu0 0.0
        %1428 = vmatprep.subr.mxu0 0.0
        %1429 = vmatpush1.msra.mxu0 0.0
        %1430 = vmatprep.subr.mxu0 0.0
        %1431 = vmatpush1.msra.mxu0 0.0
        %1432 = vmatprep.subr.mxu0 0.0
        %1433 = vmatpush1.msra.mxu0 0.0
        %1434 = vmatprep.subr.mxu0 0.0
        %1435 = vmatpush1.msra.mxu0 0.0
        %1436 = vmatprep.subr.mxu0 0.0
        %1437 = vmatpush1.msra.mxu0 0.0
        %1438 = vmatprep.subr.mxu0 0.0
        %1439 = vmatpush1.msra.mxu0 0.0
        %1440 = vmatprep.subr.mxu0 0.0
        %1441 = vmatpush1.msra.mxu0 0.0
        %1442 = vmatprep.subr.mxu0 0.0
        %1443 = vmatpush1.msra.mxu0 0.0
        %1444 = vmatprep.subr.mxu0 0.0
        %1445 = vmatpush1.msra.mxu0 0.0
        %1446 = vmatprep.subr.mxu0 0.0
        %1447 = vmatpush1.msra.mxu0 0.0
        %1448 = vmatprep.subr.mxu0 0.0
        %1449 = vmatpush1.msra.mxu0 0.0
        %1450 = vmatprep.subr.mxu0 0.0
        %1451 = vmatpush1.msra.mxu0 0.0
        %1452 = vmatprep.subr.mxu0 0.0
        %1453 = vmatpush1.msra.mxu0 0.0
        %1454 = vmatprep.subr.mxu0 0.0
        %1455 = vmatpush1.msra.mxu0 0.0
        %1456 = vmatprep.subr.mxu0 0.0
        %1457 = vmatpush1.msra.mxu0 0.0
        %1458 = vmatprep.subr.mxu0 0.0
        %1459 = vmatpush1.msra.mxu0 0.0
        %1460 = vmatprep.subr.mxu0 0.0
        %1461 = vmatpush1.msra.mxu0 0.0
        %1462 = vmatprep.subr.mxu0 0.0
        %1463 = vmatpush1.msra.mxu0 0.0
        %1464 = vmatprep.subr.mxu0 0.0
        %1465 = vmatpush1.msra.mxu0 0.0
        %1466 = vmatprep.mubr.f32.mxu0 0.0
        %1467 = vmatmul.mubr.f32.gmra.mrb[0].mxu0 %v1400
        %v1468 = vpop.f32.mrb[0].mxu0
        %v1469 = vadd.f32 %v1398, %v1468
        %v1470 = vpop.f32.mrb[0].mxu0
        %v1471 = vadd.f32 %v1398, %v1470
        %1472 = vdwg.mxu0
        %1473 = vmatprep.subr.mxu0 %v1360
        %1474 = vmatpush1.msra.mxu0 %v1359
        %1475 = vmatprep.subr.mxu0 %v1364
        %1476 = vmatpush1.msra.mxu0 %v1363
        %1477 = vmatprep.subr.mxu0 %v1368
        %1478 = vmatpush1.msra.mxu0 %v1367
        %1479 = vmatprep.subr.mxu0 %v1372
        %1480 = vmatpush1.msra.mxu0 %v1371
        %1481 = vmatprep.subr.mxu0 %v1376
        %1482 = vmatpush1.msra.mxu0 %v1375
        %1483 = vmatprep.subr.mxu0 %v1380
        %1484 = vmatpush1.msra.mxu0 %v1379
        %1485 = vmatprep.subr.mxu0 %v1384
        %1486 = vmatpush1.msra.mxu0 %v1383
        %1487 = vmatprep.subr.mxu0 %v1388
        %1488 = vmatpush1.msra.mxu0 %v1387
        %1489 = vmatprep.subr.mxu0 0.0
        %1490 = vmatpush1.msra.mxu0 0.0
        %1491 = vmatprep.subr.mxu0 0.0
        %1492 = vmatpush1.msra.mxu0 0.0
        %1493 = vmatprep.subr.mxu0 0.0
        %1494 = vmatpush1.msra.mxu0 0.0
        %1495 = vmatprep.subr.mxu0 0.0
        %1496 = vmatpush1.msra.mxu0 0.0
        %1497 = vmatprep.subr.mxu0 0.0
        %1498 = vmatpush1.msra.mxu0 0.0
        %1499 = vmatprep.subr.mxu0 0.0
        %1500 = vmatpush1.msra.mxu0 0.0
        %1501 = vmatprep.subr.mxu0 0.0
        %1502 = vmatpush1.msra.mxu0 0.0
        %1503 = vmatprep.subr.mxu0 0.0
        %1504 = vmatpush1.msra.mxu0 0.0
        %1505 = vmatprep.subr.mxu0 0.0
        %1506 = vmatpush1.msra.mxu0 0.0
        %1507 = vmatprep.subr.mxu0 0.0
        %1508 = vmatpush1.msra.mxu0 0.0
        %1509 = vmatprep.subr.mxu0 0.0
        %1510 = vmatpush1.msra.mxu0 0.0
        %1511 = vmatprep.subr.mxu0 0.0
        %1512 = vmatpush1.msra.mxu0 0.0
        %1513 = vmatprep.subr.mxu0 0.0
        %1514 = vmatpush1.msra.mxu0 0.0
        %1515 = vmatprep.subr.mxu0 0.0
        %1516 = vmatpush1.msra.mxu0 0.0
        %1517 = vmatprep.subr.mxu0 0.0
        %1518 = vmatpush1.msra.mxu0 0.0
        %1519 = vmatprep.subr.mxu0 0.0
        %1520 = vmatpush1.msra.mxu0 0.0
        %1521 = vmatprep.subr.mxu0 0.0
        %1522 = vmatpush1.msra.mxu0 0.0
        %1523 = vmatprep.subr.mxu0 0.0
        %1524 = vmatpush1.msra.mxu0 0.0
        %1525 = vmatprep.subr.mxu0 0.0
        %1526 = vmatpush1.msra.mxu0 0.0
        %1527 = vmatprep.subr.mxu0 0.0
        %1528 = vmatpush1.msra.mxu0 0.0
        %1529 = vmatprep.subr.mxu0 0.0
        %1530 = vmatpush1.msra.mxu0 0.0
        %1531 = vmatprep.subr.mxu0 0.0
        %1532 = vmatpush1.msra.mxu0 0.0
        %1533 = vmatprep.subr.mxu0 0.0
        %1534 = vmatpush1.msra.mxu0 0.0
        %1535 = vmatprep.subr.mxu0 0.0
        %1536 = vmatpush1.msra.mxu0 0.0
        %1537 = vmatprep.mubr.f32.mxu0 0.0
        %1538 = vmatmul.mubr.f32.gmra.mrb[0].mxu0 %v1400
        %v1539 = vpop.f32.mrb[0].mxu0
        %v1540 = vadd.f32 %v1398, %v1539
        %v1541 = vpop.f32.mrb[0].mxu0
        %v1542 = vadd.f32 %v1398, %v1541
        %1543 = vdwg.mxu0
        %v1548 = vcombine.low %v1469, %v1471
        %v1549 = vcombine.low %v1540, %v1542
        %v1551 = vunpack.c.l.s4 1966171168
        %v1552 = vunpack.c.0.s8 %v1551
        %v1553 = vlaneseq
        %v1554 = vshrl.u32 %v1553, 7
        %v1555 = vsub.s32 %v1552, %v1554
        %v1556 = vrot.slane %v1548, %v1555
        %v1558 = vunpack.c.l.s4 1966171168
        %v1559 = vunpack.c.0.s8 %v1558
        %v1560 = vlaneseq
        %v1561 = vshrl.u32 %v1560, 7
        %v1562 = vsub.s32 %v1559, %v1561
        %v1563 = vrot.slane %v1549, %v1562
        %v1564 = vcombine.low %v1556, %v1563
        %v1566 = vunpack.c.l.s4 1966171168
        %v1567 = vunpack.c.0.s8 %v1566
        %v1568 = vlaneseq
        %v1569 = vshrl.u32 %v1568, 7
        %v1570 = vsub.s32 %v1567, %v1569
        %v1571 = vrot.slane %v1564, %v1570
        %v1573 = vlaneseq
        %vm1574 = vcmp.ge.s32.totalorder %v1573, 0
        %vm1575 = vcmp.lt.s32.totalorder %v1573, 512
        %vm1576 = vmand %vm1574, %vm1575
        %1577 = vst.msk [vmem:[%s367] sm:$0xf] %vm1576, %v1571
        %s1578 = sand.u32 %s254, 1
        %s1579 = scalar_lea.sflag [#allocation4], %s1578
        %s1580 = sand.u32 %s254, 1
        %s1581 = smul.addr %s1580, 4
        %s1582 = scalar_lea.vmem [#allocation3], %s1581
        // Predicated region
        $region61: #{tpu_custom_call.1} parent=59 // pred_check
          %p1583 = pneg %p264
        $region62: #{tpu_custom_call.1} parent=59 // pred_check_branch
          %1585 = sbr.rel (%p1583) target = $region64
        $region63: #{tpu_custom_call.1} parent=59 // pred_region
          %s1586 = smul.u32 4, %s26
          %s1588 = ssub.s32 64, 64
          %1589 = vsyncadd %s1579, %s1588
          %s1590 = smul.addr %s1586, 16
          %s1591 = scalar_lea.hbm %s10, %s1590
          %s1593 = sshll.u32 %s1582, 4
          %s1594 = int_to_ptr.vmem [resolvable:$true] %s1593
          %1596 = dma.vmem_to_hbm [thread:$0]  %s1594, 64, %s1591, %s1579
        $region64: #{tpu_custom_call.1} parent=59 // pred_fallthru
          _
      $region60: #{tpu_custom_call.1} parent=5 // pred_fallthru
        _
      %p1597 = scmp.le.s32.totalorder 2, %s21
      // Predicated region
      $region65: #{tpu_custom_call.1} parent=5 // pred_check
        %p1598 = pneg %p1597
      $region66: #{tpu_custom_call.1} parent=5 // pred_check_branch
        %1600 = sbr.rel (%p1598) target = $region68
      $region67: #{tpu_custom_call.1} parent=5 // pred_region
        %s1601 = ssub.s32 %s21, 2
        // Predicated region
        $region69: #{tpu_custom_call.1} parent=67 // pred_check
          %p1602 = pneg %p270
        $region70: #{tpu_custom_call.1} parent=67 // pred_check_branch
          %1604 = sbr.rel (%p1602) target = $region72
        $region71: #{tpu_custom_call.1} parent=67 // pred_region
          %s1605 = sand.u32 %s255, 1
          %s1606 = scalar_lea.sflag [#allocation4], %s1605
          %s1607 = sand.u32 %s255, 1
          %s1608 = smul.addr %s1607, 4
          %s1609 = scalar_lea.vmem [#allocation3], %s1608
          %1610 = dma.done %s1606, 64
        $region72: #{tpu_custom_call.1} parent=67 // pred_fallthru
          _
      $region68: #{tpu_custom_call.1} parent=5 // pred_fallthru
        _
    $region6: #{tpu_custom_call.1} parent=1 // loop_footer
      %s25 = sadd.s32 1, %s21
    $region7: #{tpu_custom_call.1} parent=1 // loop_footer_branch
      %20 = sbr.rel target = $region3
    $region8: #{tpu_custom_call.1} parent=1 // loop_exit
      _
    %1611 = vsyncpa [#allocation4], 1
    %s1612 = scalar_lea.sflag [#allocation4], 1
    %1613 = vsyncpa %s1612, 1

</llo_original>
